<compile_context>
chip_gen: v7x
topology: tpu7x:2x2x1
jax: 0.10.0
libtpu: 0.0.40
codegen_flags: <defaults>
</compile_context>

<pallas_src>
import math

import jax
import jax.numpy as jnp
from jax import lax
from jax.experimental import pallas as pl
from jax.experimental.pallas import tpu as pltpu


def make_mha_kernel(num_heads: int, key_dim: int, num_units: int):
    """Returns a kernel closure specialized on static num_heads / key_dim / U."""
    inv_scale = 1.0 / math.sqrt(float(key_dim))
    d_head = num_units // num_heads

    def kernel(q_ref, k_ref, wq_ref, wkv_ref, o_ref):
        # q_ref:   [Nb, T_q, Dq]
        # k_ref:   [Nb, T_k, Dk]
        # wq_ref:  [Dq, U]
        # wkv_ref: [Dk, 2U]   (= [W_key | W_value], fused)
        # o_ref:   [Nb, T_q, U]
        nb, t_q, d_q = q_ref.shape
        _, t_k, d_k = k_ref.shape

        # Fused projections: one big matmul per block so the MXU sees Nb*T rows.
        q2 = q_ref[...].reshape(nb * t_q, d_q)
        k2 = k_ref[...].reshape(nb * t_k, d_k)

        qs_flat = jnp.dot(q2, wq_ref[...], preferred_element_type=jnp.float32)   # [Nb*T_q, U]
        kvs_flat = jnp.dot(k2, wkv_ref[...], preferred_element_type=jnp.float32)  # [Nb*T_k, 2U]

        qs = qs_flat.reshape(nb, t_q, num_units)
        ks = kvs_flat[:, :num_units].reshape(nb, t_k, num_units)
        vs = kvs_flat[:, num_units:].reshape(nb, t_k, num_units)

        # Per-head attention; heads unrolled statically, batched over Nb via
        # dot_general batch dimensions (no explicit transpose of K).
        head_outs = []
        for h in range(num_heads):
            lo = h * d_head
            qh = qs[:, :, lo:lo + d_head]          # [Nb, T_q, dh]
            kh = ks[:, :, lo:lo + d_head]          # [Nb, T_k, dh]
            vh = vs[:, :, lo:lo + d_head]          # [Nb, T_k, dh]

            # scores[b, q, k] = sum_d qh[b, q, d] * kh[b, k, d]
            scores = lax.dot_general(
                qh, kh,
                dimension_numbers=(((2,), (2,)), ((0,), (0,))),
                preferred_element_type=jnp.float32,
            ) * inv_scale                          # [Nb, T_q, T_k]

            # Numerically stable softmax over T_k.
            m = jnp.max(scores, axis=-1, keepdims=True)
            e = jnp.exp(scores - m)
            denom = jnp.sum(e, axis=-1, keepdims=True)
            p = e * pl.reciprocal(denom, approx=True)

            out_h = lax.dot_general(
                p, vh,
                dimension_numbers=(((2,), (1,)), ((0,), (0,))),
                preferred_element_type=jnp.float32,
            )                                      # [Nb, T_q, dh]
            head_outs.append(out_h)

        # Single lane-dense, full-width store (no masked 8-lane partial stores).
        o_ref[...] = jnp.concatenate(head_outs, axis=-1).astype(o_ref.dtype)

    return kernel


def multi_head_attention(query, key, w_query, w_key, w_value, num_heads,
                         *, batch_block=None, target_rows=256):
    """
    query:   [N, T_q, query_dim]
    key:     [N, T_k, key_dim]
    w_query: [query_dim, num_units]   (== nn.Linear.weight.T)
    w_key:   [key_dim,   num_units]
    w_value: [key_dim,   num_units]
    returns: [N, T_q, num_units]  (float32)
    """
    N, T_q, Dq = query.shape
    Nk, T_k, Dk = key.shape
    assert Nk == N
    U = w_query.shape[1]
    assert U % num_heads == 0
    d_head = U // num_heads

    # Fuse K and V projection weights -> one MXU pass yields both K and V.
    w_kv = jnp.concatenate([w_key, w_value], axis=1)   # [Dk, 2U]

    # Block several batch elements per grid step so the projection matmuls feed
    # >= ~target_rows rows to the MXU and per-step overhead is amortized.
    # (VMEM is a non-issue at these sizes; re-derive if T/D/Nb scale up,
    #  especially for v7x's 64 MiB VMEM.)
    if batch_block is None:
        batch_block = max(1, min(N, pl.cdiv(target_rows, T_q)))
    n_blocks = pl.cdiv(N, batch_block)
    N_pad = n_blocks * batch_block
    if N_pad != N:
        pad = N_pad - N
        query = jnp.pad(query, ((0, pad), (0, 0), (0, 0)))
        key = jnp.pad(key, ((0, pad), (0, 0), (0, 0)))

    kernel = make_mha_kernel(num_heads=num_heads, key_dim=Dk, num_units=U)

    flops = (2 * N_pad * T_q * Dq * U                       # Q projection
             + 2 * N_pad * T_k * Dk * (2 * U)               # fused K/V projection
             + 2 * 2 * N_pad * num_heads * T_q * T_k * d_head)  # scores + out
    transcendentals = N_pad * num_heads * T_q * T_k
    bytes_accessed = 4 * (query.size + key.size + w_query.size + w_kv.size
                          + N_pad * T_q * U)

    out = pl.pallas_call(
        kernel,
        out_shape=jax.ShapeDtypeStruct((N_pad, T_q, U), jnp.float32),
        grid_spec=pltpu.PrefetchScalarGridSpec(
            num_scalar_prefetch=0,
            grid=(n_blocks,),
            in_specs=[
                pl.BlockSpec((batch_block, T_q, Dq), lambda n: (n, 0, 0)),
                pl.BlockSpec((batch_block, T_k, Dk), lambda n: (n, 0, 0)),
                pl.BlockSpec((Dq, U), lambda n: (0, 0)),
                pl.BlockSpec((Dk, 2 * U), lambda n: (0, 0)),
            ],
            out_specs=pl.BlockSpec((batch_block, T_q, U), lambda n: (n, 0, 0)),
        ),
        compiler_params=pltpu.CompilerParams(
            dimension_semantics=("parallel",),
        ),
        cost_estimate=pl.CostEstimate(
            flops=flops,
            transcendentals=transcendentals,
            bytes_accessed=bytes_accessed,
        ),
    )(query, key, w_query, w_kv)

    if N_pad != N:
        out = out[:N]
    return out


def reference_mha(query, key, w_query, w_key, w_value, num_heads, key_dim):
    """Pure-JAX reference replicating the PyTorch forward exactly."""
    qs = query @ w_query            # [N, T_q, U]
    ks = key @ w_key                # [N, T_k, U]
    vs = key @ w_value              # [N, T_k, U]
    U = qs.shape[-1]
    dh = U // num_heads

    def split_heads(x):             # [N, T, U] -> [h, N, T, dh]
        N, T, _ = x.shape
        return jnp.transpose(x.reshape(N, T, num_heads, dh), (2, 0, 1, 3))

    qh, kh, vh = split_heads(qs), split_heads(ks), split_heads(vs)
    scores = jnp.einsum("hnqd,hnkd->hnqk", qh, kh) / math.sqrt(float(key_dim))
    p = jax.nn.softmax(scores, axis=-1)
    out = jnp.einsum("hnqk,hnkd->hnqd", p, vh)       # [h, N, T_q, dh]
    out = jnp.transpose(out, (1, 2, 0, 3)).reshape(qs.shape[0], qs.shape[1], U)
    return out


if __name__ == "__main__":
    # Small shapes consistent with the module's forward pass.
    N, T_q, T_k = 2, 8, 8
    query_dim, key_dim, num_units, num_heads = 32, 32, 32, 4

    key0 = jax.random.PRNGKey(0)
    k1, k2, k3, k4, k5 = jax.random.split(key0, 5)

    query = jax.random.normal(k1, (N, T_q, query_dim), dtype=jnp.float32)
    key_in = jax.random.normal(k2, (N, T_k, key_dim), dtype=jnp.float32)

    # Deterministic weight init (stored as [in, out], i.e. nn.Linear.weight.T).
    bound_q = 1.0 / math.sqrt(query_dim)
    bound_k = 1.0 / math.sqrt(key_dim)
    w_query = jax.random.uniform(k3, (query_dim, num_units), jnp.float32, -bound_q, bound_q)
    w_key = jax.random.uniform(k4, (key_dim, num_units), jnp.float32, -bound_k, bound_k)
    w_value = jax.random.uniform(k5, (key_dim, num_units), jnp.float32, -bound_k, bound_k)

    out = multi_head_attention(query, key_in, w_query, w_key, w_value, num_heads)
    out = jax.block_until_ready(out)

    ref = reference_mha(query, key_in, w_query, w_key, w_value, num_heads, key_dim)
    assert out.shape == (N, T_q, num_units)
    # Tolerance slightly loosened vs 1e-5 because the softmax normalization uses
    # the EUP approximate reciprocal; structural errors would be O(0.1-1).
    assert jnp.allclose(out, ref, atol=5e-3, rtol=5e-3), "mismatch vs reference"

    print("KERNEL_OK")
</pallas_src>

<mosaic_0001>
module attributes {stable_mosaic.version = 11 : i64} {
  func.func @kernel(%arg0: i32, %arg1: memref<2x8x32xf32, #tpu.memory_space<vmem>>, %arg2: memref<2x8x32xf32, #tpu.memory_space<vmem>>, %arg3: memref<32x32xf32, #tpu.memory_space<vmem>>, %arg4: memref<32x64xf32, #tpu.memory_space<vmem>>, %arg5: memref<2x8x32xf32, #tpu.memory_space<vmem>>) attributes {dimension_semantics = [#tpu.dimension_semantics<parallel>], iteration_bounds = array<i64: 1>, scalar_prefetch = 0 : i64, scratch_operands = 0 : i64, tpu.core_type = #tpu.core_type<tc>, window_params = [{transform_indices = @transform_0, window_bounds = array<i64: 2, 8, 32>}, {transform_indices = @transform_1, window_bounds = array<i64: 2, 8, 32>}, {pipeline_mode = #tpu.pipeline_mode<synchronous>, transform_indices = @transform_2, window_bounds = array<i64: 32, 32>}, {pipeline_mode = #tpu.pipeline_mode<synchronous>, transform_indices = @transform_3, window_bounds = array<i64: 32, 64>}, {transform_indices = @transform_4, window_bounds = array<i64: 2, 8, 32>}]} {
    %c0 = arith.constant 0 : index
    %c0_0 = arith.constant 0 : index
    %c0_1 = arith.constant 0 : index
    %0 = vector.load %arg1[%c0, %c0_0, %c0_1] : memref<2x8x32xf32, #tpu.memory_space<vmem>>, vector<2x8x32xf32>
    %1 = vector.shape_cast %0 : vector<2x8x32xf32> to vector<16x32xf32>
    %c0_2 = arith.constant 0 : index
    %c0_3 = arith.constant 0 : index
    %c0_4 = arith.constant 0 : index
    %2 = vector.load %arg2[%c0_2, %c0_3, %c0_4] : memref<2x8x32xf32, #tpu.memory_space<vmem>>, vector<2x8x32xf32>
    %3 = vector.shape_cast %2 : vector<2x8x32xf32> to vector<16x32xf32>
    %c0_5 = arith.constant 0 : index
    %c0_6 = arith.constant 0 : index
    %4 = vector.load %arg3[%c0_5, %c0_6] : memref<32x32xf32, #tpu.memory_space<vmem>>, vector<32x32xf32>
    %cst = arith.constant dense<0.000000e+00> : vector<16x32xf32>
    %5 = tpu.matmul %1, %4, %cst {dimension_numbers = #tpu.dot_dimension_numbers<[1], [0], [0], [1], [0, 0, 1, 1], [], []>} : vector<16x32xf32>, vector<32x32xf32>, vector<16x32xf32> -> vector<16x32xf32>
    %c0_7 = arith.constant 0 : index
    %c0_8 = arith.constant 0 : index
    %6 = vector.load %arg4[%c0_7, %c0_8] : memref<32x64xf32, #tpu.memory_space<vmem>>, vector<32x64xf32>
    %cst_9 = arith.constant dense<0.000000e+00> : vector<16x64xf32>
    %7 = tpu.matmul %3, %6, %cst_9 {dimension_numbers = #tpu.dot_dimension_numbers<[1], [0], [0], [1], [0, 0, 1, 1], [], []>} : vector<16x32xf32>, vector<32x64xf32>, vector<16x64xf32> -> vector<16x64xf32>
    %8 = vector.shape_cast %5 : vector<16x32xf32> to vector<2x8x32xf32>
    %9 = vector.extract_strided_slice %7 {offsets = [0, 0], sizes = [16, 32], strides = [1, 1]} : vector<16x64xf32> to vector<16x32xf32>
    %10 = vector.shape_cast %9 : vector<16x32xf32> to vector<2x8x32xf32>
    %11 = vector.extract_strided_slice %7 {offsets = [0, 32], sizes = [16, 32], strides = [1, 1]} : vector<16x64xf32> to vector<16x32xf32>
    %12 = vector.shape_cast %11 : vector<16x32xf32> to vector<2x8x32xf32>
    %13 = vector.extract_strided_slice %8 {offsets = [0, 0, 0], sizes = [2, 8, 8], strides = [1, 1, 1]} : vector<2x8x32xf32> to vector<2x8x8xf32>
    %14 = vector.extract_strided_slice %10 {offsets = [0, 0, 0], sizes = [2, 8, 8], strides = [1, 1, 1]} : vector<2x8x32xf32> to vector<2x8x8xf32>
    %15 = vector.extract_strided_slice %12 {offsets = [0, 0, 0], sizes = [2, 8, 8], strides = [1, 1, 1]} : vector<2x8x32xf32> to vector<2x8x8xf32>
    %cst_10 = arith.constant dense<0.000000e+00> : vector<2x8x8xf32>
    %16 = tpu.matmul %13, %14, %cst_10 {dimension_numbers = #tpu.dot_dimension_numbers<[2], [2], [1], [1], [0, 0, 0, 1, 1, 1], [0], [0]>} : vector<2x8x8xf32>, vector<2x8x8xf32>, vector<2x8x8xf32> -> vector<2x8x8xf32>
    %cst_11 = arith.constant 0.176776692 : f32
    %17 = vector.broadcast %cst_11 : f32 to vector<2x8x8xf32>
    %18 = arith.mulf %16, %17 : vector<2x8x8xf32>
    %cst_12 = arith.constant dense<0xFF800000> : vector<2x8xf32>
    %19 = vector.multi_reduction <maximumf>, %18, %cst_12 [2] : vector<2x8x8xf32> to vector<2x8xf32>
    %20 = vector.shape_cast %19 : vector<2x8xf32> to vector<2x8x1xf32>
    %21 = vector.broadcast %20 : vector<2x8x1xf32> to vector<2x8x8xf32>
    %22 = arith.subf %18, %21 : vector<2x8x8xf32>
    %23 = math.exp %22 : vector<2x8x8xf32>
    %cst_13 = arith.constant dense<0.000000e+00> : vector<2x8xf32>
    %24 = vector.multi_reduction <add>, %23, %cst_13 [2] : vector<2x8x8xf32> to vector<2x8xf32>
    %25 = vector.shape_cast %24 : vector<2x8xf32> to vector<2x8x1xf32>
    %26 = tpu.reciprocal %25 {approx = true} : vector<2x8x1xf32> -> vector<2x8x1xf32>
    %27 = vector.broadcast %26 : vector<2x8x1xf32> to vector<2x8x8xf32>
    %28 = arith.mulf %23, %27 : vector<2x8x8xf32>
    %cst_14 = arith.constant dense<0.000000e+00> : vector<2x8x8xf32>
    %29 = tpu.matmul %28, %15, %cst_14 {dimension_numbers = #tpu.dot_dimension_numbers<[2], [1], [1], [2], [0, 0, 0, 1, 1, 2], [0], [0]>} : vector<2x8x8xf32>, vector<2x8x8xf32>, vector<2x8x8xf32> -> vector<2x8x8xf32>
    %30 = vector.extract_strided_slice %8 {offsets = [0, 0, 8], sizes = [2, 8, 8], strides = [1, 1, 1]} : vector<2x8x32xf32> to vector<2x8x8xf32>
    %31 = vector.extract_strided_slice %10 {offsets = [0, 0, 8], sizes = [2, 8, 8], strides = [1, 1, 1]} : vector<2x8x32xf32> to vector<2x8x8xf32>
    %32 = vector.extract_strided_slice %12 {offsets = [0, 0, 8], sizes = [2, 8, 8], strides = [1, 1, 1]} : vector<2x8x32xf32> to vector<2x8x8xf32>
    %cst_15 = arith.constant dense<0.000000e+00> : vector<2x8x8xf32>
    %33 = tpu.matmul %30, %31, %cst_15 {dimension_numbers = #tpu.dot_dimension_numbers<[2], [2], [1], [1], [0, 0, 0, 1, 1, 1], [0], [0]>} : vector<2x8x8xf32>, vector<2x8x8xf32>, vector<2x8x8xf32> -> vector<2x8x8xf32>
    %cst_16 = arith.constant 0.176776692 : f32
    %34 = vector.broadcast %cst_16 : f32 to vector<2x8x8xf32>
    %35 = arith.mulf %33, %34 : vector<2x8x8xf32>
    %cst_17 = arith.constant dense<0xFF800000> : vector<2x8xf32>
    %36 = vector.multi_reduction <maximumf>, %35, %cst_17 [2] : vector<2x8x8xf32> to vector<2x8xf32>
    %37 = vector.shape_cast %36 : vector<2x8xf32> to vector<2x8x1xf32>
    %38 = vector.broadcast %37 : vector<2x8x1xf32> to vector<2x8x8xf32>
    %39 = arith.subf %35, %38 : vector<2x8x8xf32>
    %40 = math.exp %39 : vector<2x8x8xf32>
    %cst_18 = arith.constant dense<0.000000e+00> : vector<2x8xf32>
    %41 = vector.multi_reduction <add>, %40, %cst_18 [2] : vector<2x8x8xf32> to vector<2x8xf32>
    %42 = vector.shape_cast %41 : vector<2x8xf32> to vector<2x8x1xf32>
    %43 = tpu.reciprocal %42 {approx = true} : vector<2x8x1xf32> -> vector<2x8x1xf32>
    %44 = vector.broadcast %43 : vector<2x8x1xf32> to vector<2x8x8xf32>
    %45 = arith.mulf %40, %44 : vector<2x8x8xf32>
    %cst_19 = arith.constant dense<0.000000e+00> : vector<2x8x8xf32>
    %46 = tpu.matmul %45, %32, %cst_19 {dimension_numbers = #tpu.dot_dimension_numbers<[2], [1], [1], [2], [0, 0, 0, 1, 1, 2], [0], [0]>} : vector<2x8x8xf32>, vector<2x8x8xf32>, vector<2x8x8xf32> -> vector<2x8x8xf32>
    %47 = vector.extract_strided_slice %8 {offsets = [0, 0, 16], sizes = [2, 8, 8], strides = [1, 1, 1]} : vector<2x8x32xf32> to vector<2x8x8xf32>
    %48 = vector.extract_strided_slice %10 {offsets = [0, 0, 16], sizes = [2, 8, 8], strides = [1, 1, 1]} : vector<2x8x32xf32> to vector<2x8x8xf32>
    %49 = vector.extract_strided_slice %12 {offsets = [0, 0, 16], sizes = [2, 8, 8], strides = [1, 1, 1]} : vector<2x8x32xf32> to vector<2x8x8xf32>
    %cst_20 = arith.constant dense<0.000000e+00> : vector<2x8x8xf32>
    %50 = tpu.matmul %47, %48, %cst_20 {dimension_numbers = #tpu.dot_dimension_numbers<[2], [2], [1], [1], [0, 0, 0, 1, 1, 1], [0], [0]>} : vector<2x8x8xf32>, vector<2x8x8xf32>, vector<2x8x8xf32> -> vector<2x8x8xf32>
    %cst_21 = arith.constant 0.176776692 : f32
    %51 = vector.broadcast %cst_21 : f32 to vector<2x8x8xf32>
    %52 = arith.mulf %50, %51 : vector<2x8x8xf32>
    %cst_22 = arith.constant dense<0xFF800000> : vector<2x8xf32>
    %53 = vector.multi_reduction <maximumf>, %52, %cst_22 [2] : vector<2x8x8xf32> to vector<2x8xf32>
    %54 = vector.shape_cast %53 : vector<2x8xf32> to vector<2x8x1xf32>
    %55 = vector.broadcast %54 : vector<2x8x1xf32> to vector<2x8x8xf32>
    %56 = arith.subf %52, %55 : vector<2x8x8xf32>
    %57 = math.exp %56 : vector<2x8x8xf32>
    %cst_23 = arith.constant dense<0.000000e+00> : vector<2x8xf32>
    %58 = vector.multi_reduction <add>, %57, %cst_23 [2] : vector<2x8x8xf32> to vector<2x8xf32>
    %59 = vector.shape_cast %58 : vector<2x8xf32> to vector<2x8x1xf32>
    %60 = tpu.reciprocal %59 {approx = true} : vector<2x8x1xf32> -> vector<2x8x1xf32>
    %61 = vector.broadcast %60 : vector<2x8x1xf32> to vector<2x8x8xf32>
    %62 = arith.mulf %57, %61 : vector<2x8x8xf32>
    %cst_24 = arith.constant dense<0.000000e+00> : vector<2x8x8xf32>
    %63 = tpu.matmul %62, %49, %cst_24 {dimension_numbers = #tpu.dot_dimension_numbers<[2], [1], [1], [2], [0, 0, 0, 1, 1, 2], [0], [0]>} : vector<2x8x8xf32>, vector<2x8x8xf32>, vector<2x8x8xf32> -> vector<2x8x8xf32>
    %64 = vector.extract_strided_slice %8 {offsets = [0, 0, 24], sizes = [2, 8, 8], strides = [1, 1, 1]} : vector<2x8x32xf32> to vector<2x8x8xf32>
    %65 = vector.extract_strided_slice %10 {offsets = [0, 0, 24], sizes = [2, 8, 8], strides = [1, 1, 1]} : vector<2x8x32xf32> to vector<2x8x8xf32>
    %66 = vector.extract_strided_slice %12 {offsets = [0, 0, 24], sizes = [2, 8, 8], strides = [1, 1, 1]} : vector<2x8x32xf32> to vector<2x8x8xf32>
    %cst_25 = arith.constant dense<0.000000e+00> : vector<2x8x8xf32>
    %67 = tpu.matmul %64, %65, %cst_25 {dimension_numbers = #tpu.dot_dimension_numbers<[2], [2], [1], [1], [0, 0, 0, 1, 1, 1], [0], [0]>} : vector<2x8x8xf32>, vector<2x8x8xf32>, vector<2x8x8xf32> -> vector<2x8x8xf32>
    %cst_26 = arith.constant 0.176776692 : f32
    %68 = vector.broadcast %cst_26 : f32 to vector<2x8x8xf32>
    %69 = arith.mulf %67, %68 : vector<2x8x8xf32>
    %cst_27 = arith.constant dense<0xFF800000> : vector<2x8xf32>
    %70 = vector.multi_reduction <maximumf>, %69, %cst_27 [2] : vector<2x8x8xf32> to vector<2x8xf32>
    %71 = vector.shape_cast %70 : vector<2x8xf32> to vector<2x8x1xf32>
    %72 = vector.broadcast %71 : vector<2x8x1xf32> to vector<2x8x8xf32>
    %73 = arith.subf %69, %72 : vector<2x8x8xf32>
    %74 = math.exp %73 : vector<2x8x8xf32>
    %cst_28 = arith.constant dense<0.000000e+00> : vector<2x8xf32>
    %75 = vector.multi_reduction <add>, %74, %cst_28 [2] : vector<2x8x8xf32> to vector<2x8xf32>
    %76 = vector.shape_cast %75 : vector<2x8xf32> to vector<2x8x1xf32>
    %77 = tpu.reciprocal %76 {approx = true} : vector<2x8x1xf32> -> vector<2x8x1xf32>
    %78 = vector.broadcast %77 : vector<2x8x1xf32> to vector<2x8x8xf32>
    %79 = arith.mulf %74, %78 : vector<2x8x8xf32>
    %cst_29 = arith.constant dense<0.000000e+00> : vector<2x8x8xf32>
    %80 = tpu.matmul %79, %66, %cst_29 {dimension_numbers = #tpu.dot_dimension_numbers<[2], [1], [1], [2], [0, 0, 0, 1, 1, 2], [0], [0]>} : vector<2x8x8xf32>, vector<2x8x8xf32>, vector<2x8x8xf32> -> vector<2x8x8xf32>
    %81 = tpu.concatenate %29, %46, %63, %80 in 2 : vector<2x8x8xf32>, vector<2x8x8xf32>, vector<2x8x8xf32>, vector<2x8x8xf32> -> vector<2x8x32xf32>
    %c0_30 = arith.constant 0 : index
    %c0_31 = arith.constant 0 : index
    %c0_32 = arith.constant 0 : index
    %82 = vector.load %arg5[%c0_30, %c0_31, %c0_32] : memref<2x8x32xf32, #tpu.memory_space<vmem>>, vector<2x8x32xf32>
    tpu.vector_store %arg5[%c0_30, %c0_31, %c0_32], %81 {strides = array<i32>} : memref<2x8x32xf32, #tpu.memory_space<vmem>>, vector<2x8x32xf32>,
    return
  }
  func.func @transform_0(%arg0: i32) -> (i32, i32, i32) {
    %c0_i32 = arith.constant 0 : i32
    %c0_i32_0 = arith.constant 0 : i32
    %c0_i32_1 = arith.constant 0 : i32
    return %arg0, %c0_i32, %c0_i32_0 : i32, i32, i32
  }
  func.func @transform_1(%arg0: i32) -> (i32, i32, i32) {
    %c0_i32 = arith.constant 0 : i32
    %c0_i32_0 = arith.constant 0 : i32
    %c0_i32_1 = arith.constant 0 : i32
    return %arg0, %c0_i32, %c0_i32_0 : i32, i32, i32
  }
  func.func @transform_2(%arg0: i32) -> (i32, i32) {
    %c0_i32 = arith.constant 0 : i32
    %c0_i32_0 = arith.constant 0 : i32
    %c0_i32_1 = arith.constant 0 : i32
    return %c0_i32, %c0_i32_0 : i32, i32
  }
  func.func @transform_3(%arg0: i32) -> (i32, i32) {
    %c0_i32 = arith.constant 0 : i32
    %c0_i32_0 = arith.constant 0 : i32
    %c0_i32_1 = arith.constant 0 : i32
    return %c0_i32, %c0_i32_0 : i32, i32
  }
  func.func @transform_4(%arg0: i32) -> (i32, i32, i32) {
    %c0_i32 = arith.constant 0 : i32
    %c0_i32_0 = arith.constant 0 : i32
    %c0_i32_1 = arith.constant 0 : i32
    return %arg0, %c0_i32, %c0_i32_0 : i32, i32, i32
  }
}

</mosaic_0001>

<llo_original>
// kernel: tpu_custom_call.1
$region0: #{tpu_custom_call.1}
  #allocation0 [shape = 'u32[]', space=smem, size = 0x4, offset = 0x4, fixed_abs, tag = 'smem constant byte address 0x4 - core index']
  #allocation1 [shape = 'u32[144,128]{1,0:T(1,128)}', space=vmem, size = 0x12000, scoped, tag = 'internal scratch']
  %s0 = inlined_call_operand.hbm [shape: f32[2,8,32], index: 0, kind: input, shape index: {}]
  %s1 = inlined_call_operand.hbm [shape: f32[2,8,32], index: 1, kind: input, shape index: {}]
  %s2 = inlined_call_operand.hbm [shape: f32[32,32], index: 2, kind: input, shape index: {}]
  %s3 = inlined_call_operand.hbm [shape: f32[32,64], index: 3, kind: input, shape index: {}]
  %s4 = inlined_call_operand.hbm [shape: f32[2,8,32], index: 4, kind: output, shape index: {}]
  %s5 = sld [smem:[#allocation0]]
  $region42: #{tpu_custom_call.1} parent=0
    _
  %s7 = ssub.s32 1, %s5
  %s8 = scalar_select 0, %s7, %s5
  $region1: #{tpu_custom_call.1} parent=0
    #allocation2 [shape = 'u8[8192]{0}', space=vmem, size = 0x2000, scoped, tag = 'input window, operand 0, single buffered']
    #allocation3 [shape = 's32[1]{0}', space=sflag, size = 0x4, scoped, tag = 'scoped memory for tpu_custom_call.1']
    #allocation4 [shape = 's32[1]{0}', space=sflag, size = 0x4, scoped, tag = 'scoped memory for tpu_custom_call.1']
    #allocation5 [shape = 'u8[8192]{0}', space=vmem, size = 0x2000, scoped, tag = 'input window, operand 1, single buffered']
    #allocation6 [shape = 's32[1]{0}', space=sflag, size = 0x4, scoped, tag = 'scoped memory for tpu_custom_call.1']
    #allocation7 [shape = 'u8[16384]{0}', space=vmem, size = 0x4000, scoped, tag = 'input window, operand 2, single buffered']
    #allocation8 [shape = 'u8[16384]{0}', space=vmem, size = 0x4000, scoped, tag = 'input window, operand 3, single buffered']
    #allocation9 [shape = 's32[1]{0}', space=sflag, size = 0x4, scoped, tag = 'scoped memory for tpu_custom_call.1']
    #allocation10 [shape = 'u8[8192]{0}', space=vmem, size = 0x2000, scoped, tag = 'output window, operand 0, single buffered']
    %9 = vsyncpa [#allocation3], 0
    %10 = vsyncpa [#allocation6], 0
    %11 = vsyncpa [#allocation9], 0
    %12 = vsyncpa [#allocation4], 0
    // Predicated region
    $region2: #{tpu_custom_call.1} parent=1 // pred_check
      _
    $region3: #{tpu_custom_call.1} parent=1 // pred_check_branch
      %14 = sbr.rel (0) target = $region5
    $region4: #{tpu_custom_call.1} parent=1 // pred_region
      %s16 = ssub.s32 256, 256
      %17 = vsyncadd [#allocation3], %s16
      %s18 = sshll.u32 [#allocation2], 4
      %s19 = int_to_ptr.vmem [resolvable:$true] %s18
      %24 = dma.hbm_to_vmem [thread:$0]  %s0, 256, %s19, [#allocation3], 128, 128, 8
    $region5: #{tpu_custom_call.1} parent=1 // pred_fallthru
      _
    // Predicated region
    $region6: #{tpu_custom_call.1} parent=1 // pred_check
      _
    $region7: #{tpu_custom_call.1} parent=1 // pred_check_branch
      %26 = sbr.rel (0) target = $region9
    $region8: #{tpu_custom_call.1} parent=1 // pred_region
      %s28 = ssub.s32 256, 256
      %29 = vsyncadd [#allocation6], %s28
      %s30 = sshll.u32 [#allocation5], 4
      %s31 = int_to_ptr.vmem [resolvable:$true] %s30
      %36 = dma.hbm_to_vmem [thread:$0]  %s1, 256, %s31, [#allocation6], 128, 128, 8
    $region9: #{tpu_custom_call.1} parent=1 // pred_fallthru
      _
    // Predicated region
    $region10: #{tpu_custom_call.1} parent=1 // pred_check
      _
    $region11: #{tpu_custom_call.1} parent=1 // pred_check_branch
      %38 = sbr.rel (0) target = $region13
    $region12: #{tpu_custom_call.1} parent=1 // pred_region
      %s40 = ssub.s32 512, 512
      %41 = vsyncadd [#allocation6], %s40
      %s42 = sshll.u32 [#allocation7], 4
      %s43 = int_to_ptr.vmem [resolvable:$true] %s42
      %48 = dma.hbm_to_vmem [thread:$0]  %s2, 512, %s43, [#allocation6], 128, 128, 8
    $region13: #{tpu_custom_call.1} parent=1 // pred_fallthru
      _
    // Predicated region
    $region14: #{tpu_custom_call.1} parent=1 // pred_check
      _
    $region15: #{tpu_custom_call.1} parent=1 // pred_check_branch
      %50 = sbr.rel (0) target = $region17
    $region16: #{tpu_custom_call.1} parent=1 // pred_region
      %s52 = ssub.s32 512, 512
      %53 = vsyncadd [#allocation9], %s52
      %s54 = sshll.u32 [#allocation8], 4
      %s55 = int_to_ptr.vmem [resolvable:$true] %s54
      %60 = dma.hbm_to_vmem [thread:$0]  %s3, 512, %s55, [#allocation9], 128, 128, 8
    $region17: #{tpu_custom_call.1} parent=1 // pred_fallthru
      _
    // Predicated region
    $region18: #{tpu_custom_call.1} parent=1 // pred_check
      _
    $region19: #{tpu_custom_call.1} parent=1 // pred_check_branch
      %62 = sbr.rel (0) target = $region21
    $region20: #{tpu_custom_call.1} parent=1 // pred_region
      %63 = dma.done [#allocation3], 256
    $region21: #{tpu_custom_call.1} parent=1 // pred_fallthru
      _
    // Predicated region
    $region22: #{tpu_custom_call.1} parent=1 // pred_check
      _
    $region23: #{tpu_custom_call.1} parent=1 // pred_check_branch
      %65 = sbr.rel (0) target = $region25
    $region24: #{tpu_custom_call.1} parent=1 // pred_region
      %66 = dma.done [#allocation6], 256
    $region25: #{tpu_custom_call.1} parent=1 // pred_fallthru
      _
    // Predicated region
    $region26: #{tpu_custom_call.1} parent=1 // pred_check
      _
    $region27: #{tpu_custom_call.1} parent=1 // pred_check_branch
      %68 = sbr.rel (0) target = $region29
    $region28: #{tpu_custom_call.1} parent=1 // pred_region
      %69 = dma.done [#allocation6], 512
    $region29: #{tpu_custom_call.1} parent=1 // pred_fallthru
      _
    // Predicated region
    $region30: #{tpu_custom_call.1} parent=1 // pred_check
      _
    $region31: #{tpu_custom_call.1} parent=1 // pred_check_branch
      %71 = sbr.rel (0) target = $region33
    $region32: #{tpu_custom_call.1} parent=1 // pred_region
      %72 = dma.done [#allocation9], 512
    $region33: #{tpu_custom_call.1} parent=1 // pred_fallthru
      _
    %v73 = vld [vmem:[#allocation2] sm:$0xff]
    %v74 = vld [vmem:[#allocation2 + $0x8] sm:$0xff]
    %v75 = vld [vmem:[#allocation5] sm:$0xff]
    %v76 = vld [vmem:[#allocation5 + $0x8] sm:$0xff]
    %v77 = vld [vmem:[#allocation7] sm:$0xff]
    %v78 = vld [vmem:[#allocation7 + $0x8] sm:$0xff]
    %v79 = vld [vmem:[#allocation7 + $0x10] sm:$0xff]
    %v80 = vld [vmem:[#allocation7 + $0x18] sm:$0xff]
    %vm81 = vcmask 261120
    %v83 = vsel %vm81, %v73, 0
    %v86 = vsel %vm81, %v74, 0
    %88 = vmatprep.subr.mxu0 0.0
    %89 = vmatpush1.msra.mxu0 %v77
    %90 = vmatprep.subr.mxu0 0.0
    %91 = vmatpush1.msra.mxu0 %v78
    %92 = vmatprep.subr.mxu0 0.0
    %93 = vmatpush1.msra.mxu0 %v79
    %94 = vmatprep.subr.mxu0 0.0
    %95 = vmatpush1.msra.mxu0 %v80
    %96 = vmatprep.subr.mxu0 0.0
    %97 = vmatpush1.msra.mxu0 0.0
    %98 = vmatprep.subr.mxu0 0.0
    %99 = vmatpush1.msra.mxu0 0.0
    %100 = vmatprep.subr.mxu0 0.0
    %101 = vmatpush1.msra.mxu0 0.0
    %102 = vmatprep.subr.mxu0 0.0
    %103 = vmatpush1.msra.mxu0 0.0
    %104 = vmatprep.subr.mxu0 0.0
    %105 = vmatpush1.msra.mxu0 0.0
    %106 = vmatprep.subr.mxu0 0.0
    %107 = vmatpush1.msra.mxu0 0.0
    %108 = vmatprep.subr.mxu0 0.0
    %109 = vmatpush1.msra.mxu0 0.0
    %110 = vmatprep.subr.mxu0 0.0
    %111 = vmatpush1.msra.mxu0 0.0
    %112 = vmatprep.subr.mxu0 0.0
    %113 = vmatpush1.msra.mxu0 0.0
    %114 = vmatprep.subr.mxu0 0.0
    %115 = vmatpush1.msra.mxu0 0.0
    %116 = vmatprep.subr.mxu0 0.0
    %117 = vmatpush1.msra.mxu0 0.0
    %118 = vmatprep.subr.mxu0 0.0
    %119 = vmatpush1.msra.mxu0 0.0
    %120 = vmatprep.subr.mxu0 0.0
    %121 = vmatpush1.msra.mxu0 0.0
    %122 = vmatprep.subr.mxu0 0.0
    %123 = vmatpush1.msra.mxu0 0.0
    %124 = vmatprep.subr.mxu0 0.0
    %125 = vmatpush1.msra.mxu0 0.0
    %126 = vmatprep.subr.mxu0 0.0
    %127 = vmatpush1.msra.mxu0 0.0
    %128 = vmatprep.subr.mxu0 0.0
    %129 = vmatpush1.msra.mxu0 0.0
    %130 = vmatprep.subr.mxu0 0.0
    %131 = vmatpush1.msra.mxu0 0.0
    %132 = vmatprep.subr.mxu0 0.0
    %133 = vmatpush1.msra.mxu0 0.0
    %134 = vmatprep.subr.mxu0 0.0
    %135 = vmatpush1.msra.mxu0 0.0
    %136 = vmatprep.subr.mxu0 0.0
    %137 = vmatpush1.msra.mxu0 0.0
    %138 = vmatprep.subr.mxu0 0.0
    %139 = vmatpush1.msra.mxu0 0.0
    %140 = vmatprep.subr.mxu0 0.0
    %141 = vmatpush1.msra.mxu0 0.0
    %142 = vmatprep.subr.mxu0 0.0
    %143 = vmatpush1.msra.mxu0 0.0
    %144 = vmatprep.subr.mxu0 0.0
    %145 = vmatpush1.msra.mxu0 0.0
    %146 = vmatprep.subr.mxu0 0.0
    %147 = vmatpush1.msra.mxu0 0.0
    %148 = vmatprep.subr.mxu0 0.0
    %149 = vmatpush1.msra.mxu0 0.0
    %150 = vmatprep.subr.mxu0 0.0
    %151 = vmatpush1.msra.mxu0 0.0
    %152 = vmatprep.mubr.f32.mxu0 0.0
    %153 = vmatmul.mubr.f32.gmra.mrb[0].mxu0 %v83
    %v154 = vpop.f32.mrb[0].mxu0
    %v155 = vadd.f32 0.0, %v154
    %v156 = vpop.f32.mrb[0].mxu0
    %157 = vmatprep.mubr.f32.mxu0 0.0
    %158 = vmatmul.mubr.f32.gmra.mrb[0].mxu0 %v86
    %v159 = vpop.f32.mrb[0].mxu0
    %v160 = vadd.f32 0.0, %v159
    %v161 = vpop.f32.mrb[0].mxu0
    %162 = vdwg.mxu0
    %v163 = vld [vmem:[#allocation8] sm:$0xff]
    %v164 = vld [vmem:[#allocation8 + $0x8] sm:$0xff]
    %v165 = vld [vmem:[#allocation8 + $0x10] sm:$0xff]
    %v166 = vld [vmem:[#allocation8 + $0x18] sm:$0xff]
    %v168 = vsel %vm81, %v75, 0
    %v171 = vsel %vm81, %v76, 0
    %173 = vmatprep.subr.mxu0 0.0
    %174 = vmatpush1.msra.mxu0 %v163
    %175 = vmatprep.subr.mxu0 0.0
    %176 = vmatpush1.msra.mxu0 %v164
    %177 = vmatprep.subr.mxu0 0.0
    %178 = vmatpush1.msra.mxu0 %v165
    %179 = vmatprep.subr.mxu0 0.0
    %180 = vmatpush1.msra.mxu0 %v166
    %181 = vmatprep.subr.mxu0 0.0
    %182 = vmatpush1.msra.mxu0 0.0
    %183 = vmatprep.subr.mxu0 0.0
    %184 = vmatpush1.msra.mxu0 0.0
    %185 = vmatprep.subr.mxu0 0.0
    %186 = vmatpush1.msra.mxu0 0.0
    %187 = vmatprep.subr.mxu0 0.0
    %188 = vmatpush1.msra.mxu0 0.0
    %189 = vmatprep.subr.mxu0 0.0
    %190 = vmatpush1.msra.mxu0 0.0
    %191 = vmatprep.subr.mxu0 0.0
    %192 = vmatpush1.msra.mxu0 0.0
    %193 = vmatprep.subr.mxu0 0.0
    %194 = vmatpush1.msra.mxu0 0.0
    %195 = vmatprep.subr.mxu0 0.0
    %196 = vmatpush1.msra.mxu0 0.0
    %197 = vmatprep.subr.mxu0 0.0
    %198 = vmatpush1.msra.mxu0 0.0
    %199 = vmatprep.subr.mxu0 0.0
    %200 = vmatpush1.msra.mxu0 0.0
    %201 = vmatprep.subr.mxu0 0.0
    %202 = vmatpush1.msra.mxu0 0.0
    %203 = vmatprep.subr.mxu0 0.0
    %204 = vmatpush1.msra.mxu0 0.0
    %205 = vmatprep.subr.mxu0 0.0
    %206 = vmatpush1.msra.mxu0 0.0
    %207 = vmatprep.subr.mxu0 0.0
    %208 = vmatpush1.msra.mxu0 0.0
    %209 = vmatprep.subr.mxu0 0.0
    %210 = vmatpush1.msra.mxu0 0.0
    %211 = vmatprep.subr.mxu0 0.0
    %212 = vmatpush1.msra.mxu0 0.0
    %213 = vmatprep.subr.mxu0 0.0
    %214 = vmatpush1.msra.mxu0 0.0
    %215 = vmatprep.subr.mxu0 0.0
    %216 = vmatpush1.msra.mxu0 0.0
    %217 = vmatprep.subr.mxu0 0.0
    %218 = vmatpush1.msra.mxu0 0.0
    %219 = vmatprep.subr.mxu0 0.0
    %220 = vmatpush1.msra.mxu0 0.0
    %221 = vmatprep.subr.mxu0 0.0
    %222 = vmatpush1.msra.mxu0 0.0
    %223 = vmatprep.subr.mxu0 0.0
    %224 = vmatpush1.msra.mxu0 0.0
    %225 = vmatprep.subr.mxu0 0.0
    %226 = vmatpush1.msra.mxu0 0.0
    %227 = vmatprep.subr.mxu0 0.0
    %228 = vmatpush1.msra.mxu0 0.0
    %229 = vmatprep.subr.mxu0 0.0
    %230 = vmatpush1.msra.mxu0 0.0
    %231 = vmatprep.subr.mxu0 0.0
    %232 = vmatpush1.msra.mxu0 0.0
    %233 = vmatprep.subr.mxu0 0.0
    %234 = vmatpush1.msra.mxu0 0.0
    %235 = vmatprep.subr.mxu0 0.0
    %236 = vmatpush1.msra.mxu0 0.0
    %237 = vmatprep.mubr.f32.mxu0 0.0
    %238 = vmatmul.mubr.f32.gmra.mrb[0].mxu0 %v168
    %v239 = vpop.f32.mrb[0].mxu0
    %v240 = vadd.f32 0.0, %v239
    %v241 = vpop.f32.mrb[0].mxu0
    %242 = vmatprep.mubr.f32.mxu0 0.0
    %243 = vmatmul.mubr.f32.gmra.mrb[0].mxu0 %v171
    %v244 = vpop.f32.mrb[0].mxu0
    %v245 = vadd.f32 0.0, %v244
    %v246 = vpop.f32.mrb[0].mxu0
    %247 = vdwg.mxu0
    %vm248 = vcmask 64512
    %v250 = vsel %vm248, %v155, 0
    %v253 = vsel %vm248, %v240, 0
    %255 = vmatprep.subr.mxu0 0.0
    %256 = vmatpush1.xpose.msra.mxu0 %v253
    %257 = vmatprep.subr.mxu0 0.0
    %258 = vmatpush1.xpose.msra.mxu0 0.0
    %259 = vmatprep.subr.mxu0 0.0
    %260 = vmatpush1.xpose.msra.mxu0 0.0
    %261 = vmatprep.subr.mxu0 0.0
    %262 = vmatpush1.xpose.msra.mxu0 0.0
    %263 = vmatprep.subr.mxu0 0.0
    %264 = vmatpush1.xpose.msra.mxu0 0.0
    %265 = vmatprep.subr.mxu0 0.0
    %266 = vmatpush1.xpose.msra.mxu0 0.0
    %267 = vmatprep.subr.mxu0 0.0
    %268 = vmatpush1.xpose.msra.mxu0 0.0
    %269 = vmatprep.subr.mxu0 0.0
    %270 = vmatpush1.xpose.msra.mxu0 0.0
    %271 = vmatprep.subr.mxu0 0.0
    %272 = vmatpush1.xpose.msra.mxu0 0.0
    %273 = vmatprep.subr.mxu0 0.0
    %274 = vmatpush1.xpose.msra.mxu0 0.0
    %275 = vmatprep.subr.mxu0 0.0
    %276 = vmatpush1.xpose.msra.mxu0 0.0
    %277 = vmatprep.subr.mxu0 0.0
    %278 = vmatpush1.xpose.msra.mxu0 0.0
    %279 = vmatprep.subr.mxu0 0.0
    %280 = vmatpush1.xpose.msra.mxu0 0.0
    %281 = vmatprep.subr.mxu0 0.0
    %282 = vmatpush1.xpose.msra.mxu0 0.0
    %283 = vmatprep.subr.mxu0 0.0
    %284 = vmatpush1.xpose.msra.mxu0 0.0
    %285 = vmatprep.subr.mxu0 0.0
    %286 = vmatpush1.xpose.msra.mxu0 0.0
    %287 = vmatprep.subr.mxu0 0.0
    %288 = vmatpush1.xpose.msra.mxu0 0.0
    %289 = vmatprep.subr.mxu0 0.0
    %290 = vmatpush1.xpose.msra.mxu0 0.0
    %291 = vmatprep.subr.mxu0 0.0
    %292 = vmatpush1.xpose.msra.mxu0 0.0
    %293 = vmatprep.subr.mxu0 0.0
    %294 = vmatpush1.xpose.msra.mxu0 0.0
    %295 = vmatprep.subr.mxu0 0.0
    %296 = vmatpush1.xpose.msra.mxu0 0.0
    %297 = vmatprep.subr.mxu0 0.0
    %298 = vmatpush1.xpose.msra.mxu0 0.0
    %299 = vmatprep.subr.mxu0 0.0
    %300 = vmatpush1.xpose.msra.mxu0 0.0
    %301 = vmatprep.subr.mxu0 0.0
    %302 = vmatpush1.xpose.msra.mxu0 0.0
    %303 = vmatprep.subr.mxu0 0.0
    %304 = vmatpush1.xpose.msra.mxu0 0.0
    %305 = vmatprep.subr.mxu0 0.0
    %306 = vmatpush1.xpose.msra.mxu0 0.0
    %307 = vmatprep.subr.mxu0 0.0
    %308 = vmatpush1.xpose.msra.mxu0 0.0
    %309 = vmatprep.subr.mxu0 0.0
    %310 = vmatpush1.xpose.msra.mxu0 0.0
    %311 = vmatprep.subr.mxu0 0.0
    %312 = vmatpush1.xpose.msra.mxu0 0.0
    %313 = vmatprep.subr.mxu0 0.0
    %314 = vmatpush1.xpose.msra.mxu0 0.0
    %315 = vmatprep.subr.mxu0 0.0
    %316 = vmatpush1.xpose.msra.mxu0 0.0
    %317 = vmatprep.subr.mxu0 0.0
    %318 = vmatpush1.xpose.msra.mxu0 0.0
    %319 = vmatprep.mubr.f32.mxu0 0.0
    %320 = vmatmul.mubr.f32.gmra.mrb[0].mxu0 %v250
    %v321 = vpop.f32.mrb[0].mxu0
    %v322 = vadd.f32 0.0, %v321
    %v323 = vpop.f32.mrb[0].mxu0
    %324 = vdwg.mxu0
    %v326 = vsel %vm248, %v160, 0
    %v329 = vsel %vm248, %v245, 0
    %331 = vmatprep.subr.mxu0 0.0
    %332 = vmatpush1.xpose.msra.mxu0 %v329
    %333 = vmatprep.subr.mxu0 0.0
    %334 = vmatpush1.xpose.msra.mxu0 0.0
    %335 = vmatprep.subr.mxu0 0.0
    %336 = vmatpush1.xpose.msra.mxu0 0.0
    %337 = vmatprep.subr.mxu0 0.0
    %338 = vmatpush1.xpose.msra.mxu0 0.0
    %339 = vmatprep.subr.mxu0 0.0
    %340 = vmatpush1.xpose.msra.mxu0 0.0
    %341 = vmatprep.subr.mxu0 0.0
    %342 = vmatpush1.xpose.msra.mxu0 0.0
    %343 = vmatprep.subr.mxu0 0.0
    %344 = vmatpush1.xpose.msra.mxu0 0.0
    %345 = vmatprep.subr.mxu0 0.0
    %346 = vmatpush1.xpose.msra.mxu0 0.0
    %347 = vmatprep.subr.mxu0 0.0
    %348 = vmatpush1.xpose.msra.mxu0 0.0
    %349 = vmatprep.subr.mxu0 0.0
    %350 = vmatpush1.xpose.msra.mxu0 0.0
    %351 = vmatprep.subr.mxu0 0.0
    %352 = vmatpush1.xpose.msra.mxu0 0.0
    %353 = vmatprep.subr.mxu0 0.0
    %354 = vmatpush1.xpose.msra.mxu0 0.0
    %355 = vmatprep.subr.mxu0 0.0
    %356 = vmatpush1.xpose.msra.mxu0 0.0
    %357 = vmatprep.subr.mxu0 0.0
    %358 = vmatpush1.xpose.msra.mxu0 0.0
    %359 = vmatprep.subr.mxu0 0.0
    %360 = vmatpush1.xpose.msra.mxu0 0.0
    %361 = vmatprep.subr.mxu0 0.0
    %362 = vmatpush1.xpose.msra.mxu0 0.0
    %363 = vmatprep.subr.mxu0 0.0
    %364 = vmatpush1.xpose.msra.mxu0 0.0
    %365 = vmatprep.subr.mxu0 0.0
    %366 = vmatpush1.xpose.msra.mxu0 0.0
    %367 = vmatprep.subr.mxu0 0.0
    %368 = vmatpush1.xpose.msra.mxu0 0.0
    %369 = vmatprep.subr.mxu0 0.0
    %370 = vmatpush1.xpose.msra.mxu0 0.0
    %371 = vmatprep.subr.mxu0 0.0
    %372 = vmatpush1.xpose.msra.mxu0 0.0
    %373 = vmatprep.subr.mxu0 0.0
    %374 = vmatpush1.xpose.msra.mxu0 0.0
    %375 = vmatprep.subr.mxu0 0.0
    %376 = vmatpush1.xpose.msra.mxu0 0.0
    %377 = vmatprep.subr.mxu0 0.0
    %378 = vmatpush1.xpose.msra.mxu0 0.0
    %379 = vmatprep.subr.mxu0 0.0
    %380 = vmatpush1.xpose.msra.mxu0 0.0
    %381 = vmatprep.subr.mxu0 0.0
    %382 = vmatpush1.xpose.msra.mxu0 0.0
    %383 = vmatprep.subr.mxu0 0.0
    %384 = vmatpush1.xpose.msra.mxu0 0.0
    %385 = vmatprep.subr.mxu0 0.0
    %386 = vmatpush1.xpose.msra.mxu0 0.0
    %387 = vmatprep.subr.mxu0 0.0
    %388 = vmatpush1.xpose.msra.mxu0 0.0
    %389 = vmatprep.subr.mxu0 0.0
    %390 = vmatpush1.xpose.msra.mxu0 0.0
    %391 = vmatprep.subr.mxu0 0.0
    %392 = vmatpush1.xpose.msra.mxu0 0.0
    %393 = vmatprep.subr.mxu0 0.0
    %394 = vmatpush1.xpose.msra.mxu0 0.0
    %395 = vmatprep.mubr.f32.mxu0 0.0
    %396 = vmatmul.mubr.f32.gmra.mrb[0].mxu0 %v326
    %v397 = vpop.f32.mrb[0].mxu0
    %v398 = vadd.f32 0.0, %v397
    %v399 = vpop.f32.mrb[0].mxu0
    %400 = vdwg.mxu0
    %v401 = vmul.f32 %v322, 0.17677669
    %v402 = vmul.f32 %v398, 0.17677669
    %v403 = vsel %vm248, %v401, -inf
    %404 = vmax.xlane.f32.xlu0 %v403
    %v405 = vpop.xlane.xlu0 %404
    %v406 = vsel %vm248, %v402, -inf
    %407 = vmax.xlane.f32.xlu0 %v406
    %v408 = vpop.xlane.xlu0 %407
    %v409 = vsub.f32 %v401, %v405
    %v410 = vsub.f32 %v402, %v408
    %v411 = vmul.f32 %v409, 1.442695
    %v412 = vpow.pop %v411
    %v413 = vmul.f32 %v410, 1.442695
    %v414 = vpow.pop %v413
    %v415 = vsel %vm248, %v412, 0.0
    %416 = vadd.xlane.f32.xlu0 %v415
    %v417 = vpop.xlane.xlu0 %416
    %v418 = vsel %vm248, %v414, 0.0
    %419 = vadd.xlane.f32.xlu0 %v418
    %v420 = vpop.xlane.xlu0 %419
    %v421 = vrcp.pop %v417
    %v422 = vrcp.pop %v420
    %v423 = vmul.f32 %v412, %v421
    %v424 = vmul.f32 %v414, %v422
    %425 = vrot.lane.b32.xlu0 %v240, 96
    %v426 = vpop.permute.xlu0 %425
    %v429 = vsel %vm248, %v423, 0
    %431 = vmatprep.subr.mxu0 0.0
    %432 = vmatpush1.msra.mxu0 %v426
    %433 = vmatprep.subr.mxu0 0.0
    %434 = vmatpush1.msra.mxu0 0.0
    %435 = vmatprep.subr.mxu0 0.0
    %436 = vmatpush1.msra.mxu0 0.0
    %437 = vmatprep.subr.mxu0 0.0
    %438 = vmatpush1.msra.mxu0 0.0
    %439 = vmatprep.subr.mxu0 0.0
    %440 = vmatpush1.msra.mxu0 0.0
    %441 = vmatprep.subr.mxu0 0.0
    %442 = vmatpush1.msra.mxu0 0.0
    %443 = vmatprep.subr.mxu0 0.0
    %444 = vmatpush1.msra.mxu0 0.0
    %445 = vmatprep.subr.mxu0 0.0
    %446 = vmatpush1.msra.mxu0 0.0
    %447 = vmatprep.subr.mxu0 0.0
    %448 = vmatpush1.msra.mxu0 0.0
    %449 = vmatprep.subr.mxu0 0.0
    %450 = vmatpush1.msra.mxu0 0.0
    %451 = vmatprep.subr.mxu0 0.0
    %452 = vmatpush1.msra.mxu0 0.0
    %453 = vmatprep.subr.mxu0 0.0
    %454 = vmatpush1.msra.mxu0 0.0
    %455 = vmatprep.subr.mxu0 0.0
    %456 = vmatpush1.msra.mxu0 0.0
    %457 = vmatprep.subr.mxu0 0.0
    %458 = vmatpush1.msra.mxu0 0.0
    %459 = vmatprep.subr.mxu0 0.0
    %460 = vmatpush1.msra.mxu0 0.0
    %461 = vmatprep.subr.mxu0 0.0
    %462 = vmatpush1.msra.mxu0 0.0
    %463 = vmatprep.subr.mxu0 0.0
    %464 = vmatpush1.msra.mxu0 0.0
    %465 = vmatprep.subr.mxu0 0.0
    %466 = vmatpush1.msra.mxu0 0.0
    %467 = vmatprep.subr.mxu0 0.0
    %468 = vmatpush1.msra.mxu0 0.0
    %469 = vmatprep.subr.mxu0 0.0
    %470 = vmatpush1.msra.mxu0 0.0
    %471 = vmatprep.subr.mxu0 0.0
    %472 = vmatpush1.msra.mxu0 0.0
    %473 = vmatprep.subr.mxu0 0.0
    %474 = vmatpush1.msra.mxu0 0.0
    %475 = vmatprep.subr.mxu0 0.0
    %476 = vmatpush1.msra.mxu0 0.0
    %477 = vmatprep.subr.mxu0 0.0
    %478 = vmatpush1.msra.mxu0 0.0
    %479 = vmatprep.subr.mxu0 0.0
    %480 = vmatpush1.msra.mxu0 0.0
    %481 = vmatprep.subr.mxu0 0.0
    %482 = vmatpush1.msra.mxu0 0.0
    %483 = vmatprep.subr.mxu0 0.0
    %484 = vmatpush1.msra.mxu0 0.0
    %485 = vmatprep.subr.mxu0 0.0
    %486 = vmatpush1.msra.mxu0 0.0
    %487 = vmatprep.subr.mxu0 0.0
    %488 = vmatpush1.msra.mxu0 0.0
    %489 = vmatprep.subr.mxu0 0.0
    %490 = vmatpush1.msra.mxu0 0.0
    %491 = vmatprep.subr.mxu0 0.0
    %492 = vmatpush1.msra.mxu0 0.0
    %493 = vmatprep.subr.mxu0 0.0
    %494 = vmatpush1.msra.mxu0 0.0
    %495 = vmatprep.mubr.f32.mxu0 0.0
    %496 = vmatmul.mubr.f32.gmra.mrb[0].mxu0 %v429
    %v497 = vpop.f32.mrb[0].mxu0
    %v498 = vadd.f32 0.0, %v497
    %v499 = vpop.f32.mrb[0].mxu0
    %500 = vdwg.mxu0
    %501 = vrot.lane.b32.xlu0 %v245, 96
    %v502 = vpop.permute.xlu0 %501
    %v505 = vsel %vm248, %v424, 0
    %507 = vmatprep.subr.mxu0 0.0
    %508 = vmatpush1.msra.mxu0 %v502
    %509 = vmatprep.subr.mxu0 0.0
    %510 = vmatpush1.msra.mxu0 0.0
    %511 = vmatprep.subr.mxu0 0.0
    %512 = vmatpush1.msra.mxu0 0.0
    %513 = vmatprep.subr.mxu0 0.0
    %514 = vmatpush1.msra.mxu0 0.0
    %515 = vmatprep.subr.mxu0 0.0
    %516 = vmatpush1.msra.mxu0 0.0
    %517 = vmatprep.subr.mxu0 0.0
    %518 = vmatpush1.msra.mxu0 0.0
    %519 = vmatprep.subr.mxu0 0.0
    %520 = vmatpush1.msra.mxu0 0.0
    %521 = vmatprep.subr.mxu0 0.0
    %522 = vmatpush1.msra.mxu0 0.0
    %523 = vmatprep.subr.mxu0 0.0
    %524 = vmatpush1.msra.mxu0 0.0
    %525 = vmatprep.subr.mxu0 0.0
    %526 = vmatpush1.msra.mxu0 0.0
    %527 = vmatprep.subr.mxu0 0.0
    %528 = vmatpush1.msra.mxu0 0.0
    %529 = vmatprep.subr.mxu0 0.0
    %530 = vmatpush1.msra.mxu0 0.0
    %531 = vmatprep.subr.mxu0 0.0
    %532 = vmatpush1.msra.mxu0 0.0
    %533 = vmatprep.subr.mxu0 0.0
    %534 = vmatpush1.msra.mxu0 0.0
    %535 = vmatprep.subr.mxu0 0.0
    %536 = vmatpush1.msra.mxu0 0.0
    %537 = vmatprep.subr.mxu0 0.0
    %538 = vmatpush1.msra.mxu0 0.0
    %539 = vmatprep.subr.mxu0 0.0
    %540 = vmatpush1.msra.mxu0 0.0
    %541 = vmatprep.subr.mxu0 0.0
    %542 = vmatpush1.msra.mxu0 0.0
    %543 = vmatprep.subr.mxu0 0.0
    %544 = vmatpush1.msra.mxu0 0.0
    %545 = vmatprep.subr.mxu0 0.0
    %546 = vmatpush1.msra.mxu0 0.0
    %547 = vmatprep.subr.mxu0 0.0
    %548 = vmatpush1.msra.mxu0 0.0
    %549 = vmatprep.subr.mxu0 0.0
    %550 = vmatpush1.msra.mxu0 0.0
    %551 = vmatprep.subr.mxu0 0.0
    %552 = vmatpush1.msra.mxu0 0.0
    %553 = vmatprep.subr.mxu0 0.0
    %554 = vmatpush1.msra.mxu0 0.0
    %555 = vmatprep.subr.mxu0 0.0
    %556 = vmatpush1.msra.mxu0 0.0
    %557 = vmatprep.subr.mxu0 0.0
    %558 = vmatpush1.msra.mxu0 0.0
    %559 = vmatprep.subr.mxu0 0.0
    %560 = vmatpush1.msra.mxu0 0.0
    %561 = vmatprep.subr.mxu0 0.0
    %562 = vmatpush1.msra.mxu0 0.0
    %563 = vmatprep.subr.mxu0 0.0
    %564 = vmatpush1.msra.mxu0 0.0
    %565 = vmatprep.subr.mxu0 0.0
    %566 = vmatpush1.msra.mxu0 0.0
    %567 = vmatprep.subr.mxu0 0.0
    %568 = vmatpush1.msra.mxu0 0.0
    %569 = vmatprep.subr.mxu0 0.0
    %570 = vmatpush1.msra.mxu0 0.0
    %571 = vmatprep.mubr.f32.mxu0 0.0
    %572 = vmatmul.mubr.f32.gmra.mrb[0].mxu0 %v505
    %v573 = vpop.f32.mrb[0].mxu0
    %v574 = vadd.f32 0.0, %v573
    %v575 = vpop.f32.mrb[0].mxu0
    %576 = vdwg.mxu0
    %577 = vrot.lane.b32.xlu0 %v155, 120
    %v578 = vpop.permute.xlu0 %577
    %579 = vrot.lane.b32.xlu0 %v240, 120
    %v580 = vpop.permute.xlu0 %579
    %v581 = vsel %vm248, %v578, 0
    %v583 = vsel %vm248, %v580, 0
    %585 = vmatprep.subr.mxu0 0.0
    %586 = vmatpush1.xpose.msra.mxu0 %v583
    %587 = vmatprep.subr.mxu0 0.0
    %588 = vmatpush1.xpose.msra.mxu0 0.0
    %589 = vmatprep.subr.mxu0 0.0
    %590 = vmatpush1.xpose.msra.mxu0 0.0
    %591 = vmatprep.subr.mxu0 0.0
    %592 = vmatpush1.xpose.msra.mxu0 0.0
    %593 = vmatprep.subr.mxu0 0.0
    %594 = vmatpush1.xpose.msra.mxu0 0.0
    %595 = vmatprep.subr.mxu0 0.0
    %596 = vmatpush1.xpose.msra.mxu0 0.0
    %597 = vmatprep.subr.mxu0 0.0
    %598 = vmatpush1.xpose.msra.mxu0 0.0
    %599 = vmatprep.subr.mxu0 0.0
    %600 = vmatpush1.xpose.msra.mxu0 0.0
    %601 = vmatprep.subr.mxu0 0.0
    %602 = vmatpush1.xpose.msra.mxu0 0.0
    %603 = vmatprep.subr.mxu0 0.0
    %604 = vmatpush1.xpose.msra.mxu0 0.0
    %605 = vmatprep.subr.mxu0 0.0
    %606 = vmatpush1.xpose.msra.mxu0 0.0
    %607 = vmatprep.subr.mxu0 0.0
    %608 = vmatpush1.xpose.msra.mxu0 0.0
    %609 = vmatprep.subr.mxu0 0.0
    %610 = vmatpush1.xpose.msra.mxu0 0.0
    %611 = vmatprep.subr.mxu0 0.0
    %612 = vmatpush1.xpose.msra.mxu0 0.0
    %613 = vmatprep.subr.mxu0 0.0
    %614 = vmatpush1.xpose.msra.mxu0 0.0
    %615 = vmatprep.subr.mxu0 0.0
    %616 = vmatpush1.xpose.msra.mxu0 0.0
    %617 = vmatprep.subr.mxu0 0.0
    %618 = vmatpush1.xpose.msra.mxu0 0.0
    %619 = vmatprep.subr.mxu0 0.0
    %620 = vmatpush1.xpose.msra.mxu0 0.0
    %621 = vmatprep.subr.mxu0 0.0
    %622 = vmatpush1.xpose.msra.mxu0 0.0
    %623 = vmatprep.subr.mxu0 0.0
    %624 = vmatpush1.xpose.msra.mxu0 0.0
    %625 = vmatprep.subr.mxu0 0.0
    %626 = vmatpush1.xpose.msra.mxu0 0.0
    %627 = vmatprep.subr.mxu0 0.0
    %628 = vmatpush1.xpose.msra.mxu0 0.0
    %629 = vmatprep.subr.mxu0 0.0
    %630 = vmatpush1.xpose.msra.mxu0 0.0
    %631 = vmatprep.subr.mxu0 0.0
    %632 = vmatpush1.xpose.msra.mxu0 0.0
    %633 = vmatprep.subr.mxu0 0.0
    %634 = vmatpush1.xpose.msra.mxu0 0.0
    %635 = vmatprep.subr.mxu0 0.0
    %636 = vmatpush1.xpose.msra.mxu0 0.0
    %637 = vmatprep.subr.mxu0 0.0
    %638 = vmatpush1.xpose.msra.mxu0 0.0
    %639 = vmatprep.subr.mxu0 0.0
    %640 = vmatpush1.xpose.msra.mxu0 0.0
    %641 = vmatprep.subr.mxu0 0.0
    %642 = vmatpush1.xpose.msra.mxu0 0.0
    %643 = vmatprep.subr.mxu0 0.0
    %644 = vmatpush1.xpose.msra.mxu0 0.0
    %645 = vmatprep.subr.mxu0 0.0
    %646 = vmatpush1.xpose.msra.mxu0 0.0
    %647 = vmatprep.subr.mxu0 0.0
    %648 = vmatpush1.xpose.msra.mxu0 0.0
    %649 = vmatprep.mubr.f32.mxu0 0.0
    %650 = vmatmul.mubr.f32.gmra.mrb[0].mxu0 %v581
    %v651 = vpop.f32.mrb[0].mxu0
    %v652 = vadd.f32 0.0, %v651
    %v653 = vpop.f32.mrb[0].mxu0
    %654 = vdwg.mxu0
    %655 = vrot.lane.b32.xlu0 %v160, 120
    %v656 = vpop.permute.xlu0 %655
    %657 = vrot.lane.b32.xlu0 %v245, 120
    %v658 = vpop.permute.xlu0 %657
    %v659 = vsel %vm248, %v656, 0
    %v661 = vsel %vm248, %v658, 0
    %663 = vmatprep.subr.mxu0 0.0
    %664 = vmatpush1.xpose.msra.mxu0 %v661
    %665 = vmatprep.subr.mxu0 0.0
    %666 = vmatpush1.xpose.msra.mxu0 0.0
    %667 = vmatprep.subr.mxu0 0.0
    %668 = vmatpush1.xpose.msra.mxu0 0.0
    %669 = vmatprep.subr.mxu0 0.0
    %670 = vmatpush1.xpose.msra.mxu0 0.0
    %671 = vmatprep.subr.mxu0 0.0
    %672 = vmatpush1.xpose.msra.mxu0 0.0
    %673 = vmatprep.subr.mxu0 0.0
    %674 = vmatpush1.xpose.msra.mxu0 0.0
    %675 = vmatprep.subr.mxu0 0.0
    %676 = vmatpush1.xpose.msra.mxu0 0.0
    %677 = vmatprep.subr.mxu0 0.0
    %678 = vmatpush1.xpose.msra.mxu0 0.0
    %679 = vmatprep.subr.mxu0 0.0
    %680 = vmatpush1.xpose.msra.mxu0 0.0
    %681 = vmatprep.subr.mxu0 0.0
    %682 = vmatpush1.xpose.msra.mxu0 0.0
    %683 = vmatprep.subr.mxu0 0.0
    %684 = vmatpush1.xpose.msra.mxu0 0.0
    %685 = vmatprep.subr.mxu0 0.0
    %686 = vmatpush1.xpose.msra.mxu0 0.0
    %687 = vmatprep.subr.mxu0 0.0
    %688 = vmatpush1.xpose.msra.mxu0 0.0
    %689 = vmatprep.subr.mxu0 0.0
    %690 = vmatpush1.xpose.msra.mxu0 0.0
    %691 = vmatprep.subr.mxu0 0.0
    %692 = vmatpush1.xpose.msra.mxu0 0.0
    %693 = vmatprep.subr.mxu0 0.0
    %694 = vmatpush1.xpose.msra.mxu0 0.0
    %695 = vmatprep.subr.mxu0 0.0
    %696 = vmatpush1.xpose.msra.mxu0 0.0
    %697 = vmatprep.subr.mxu0 0.0
    %698 = vmatpush1.xpose.msra.mxu0 0.0
    %699 = vmatprep.subr.mxu0 0.0
    %700 = vmatpush1.xpose.msra.mxu0 0.0
    %701 = vmatprep.subr.mxu0 0.0
    %702 = vmatpush1.xpose.msra.mxu0 0.0
    %703 = vmatprep.subr.mxu0 0.0
    %704 = vmatpush1.xpose.msra.mxu0 0.0
    %705 = vmatprep.subr.mxu0 0.0
    %706 = vmatpush1.xpose.msra.mxu0 0.0
    %707 = vmatprep.subr.mxu0 0.0
    %708 = vmatpush1.xpose.msra.mxu0 0.0
    %709 = vmatprep.subr.mxu0 0.0
    %710 = vmatpush1.xpose.msra.mxu0 0.0
    %711 = vmatprep.subr.mxu0 0.0
    %712 = vmatpush1.xpose.msra.mxu0 0.0
    %713 = vmatprep.subr.mxu0 0.0
    %714 = vmatpush1.xpose.msra.mxu0 0.0
    %715 = vmatprep.subr.mxu0 0.0
    %716 = vmatpush1.xpose.msra.mxu0 0.0
    %717 = vmatprep.subr.mxu0 0.0
    %718 = vmatpush1.xpose.msra.mxu0 0.0
    %719 = vmatprep.subr.mxu0 0.0
    %720 = vmatpush1.xpose.msra.mxu0 0.0
    %721 = vmatprep.subr.mxu0 0.0
    %722 = vmatpush1.xpose.msra.mxu0 0.0
    %723 = vmatprep.subr.mxu0 0.0
    %724 = vmatpush1.xpose.msra.mxu0 0.0
    %725 = vmatprep.subr.mxu0 0.0
    %726 = vmatpush1.xpose.msra.mxu0 0.0
    %727 = vmatprep.mubr.f32.mxu0 0.0
    %728 = vmatmul.mubr.f32.gmra.mrb[0].mxu0 %v659
    %v729 = vpop.f32.mrb[0].mxu0
    %v730 = vadd.f32 0.0, %v729
    %v731 = vpop.f32.mrb[0].mxu0
    %732 = vdwg.mxu0
    %v733 = vmul.f32 %v652, 0.17677669
    %v734 = vmul.f32 %v730, 0.17677669
    %v735 = vsel %vm248, %v733, -inf
    %736 = vmax.xlane.f32.xlu0 %v735
    %v737 = vpop.xlane.xlu0 %736
    %v738 = vsel %vm248, %v734, -inf
    %739 = vmax.xlane.f32.xlu0 %v738
    %v740 = vpop.xlane.xlu0 %739
    %v741 = vsub.f32 %v733, %v737
    %v742 = vsub.f32 %v734, %v740
    %v743 = vmul.f32 %v741, 1.442695
    %v744 = vpow.pop %v743
    %v745 = vmul.f32 %v742, 1.442695
    %v746 = vpow.pop %v745
    %v747 = vsel %vm248, %v744, 0.0
    %748 = vadd.xlane.f32.xlu0 %v747
    %v749 = vpop.xlane.xlu0 %748
    %v750 = vsel %vm248, %v746, 0.0
    %751 = vadd.xlane.f32.xlu0 %v750
    %v752 = vpop.xlane.xlu0 %751
    %v753 = vrcp.pop %v749
    %v754 = vrcp.pop %v752
    %v755 = vmul.f32 %v744, %v753
    %v756 = vmul.f32 %v746, %v754
    %757 = vrot.lane.b32.xlu0 %v240, 88
    %v758 = vpop.permute.xlu0 %757
    %v761 = vsel %vm248, %v755, 0
    %763 = vmatprep.subr.mxu0 0.0
    %764 = vmatpush1.msra.mxu0 %v758
    %765 = vmatprep.subr.mxu0 0.0
    %766 = vmatpush1.msra.mxu0 0.0
    %767 = vmatprep.subr.mxu0 0.0
    %768 = vmatpush1.msra.mxu0 0.0
    %769 = vmatprep.subr.mxu0 0.0
    %770 = vmatpush1.msra.mxu0 0.0
    %771 = vmatprep.subr.mxu0 0.0
    %772 = vmatpush1.msra.mxu0 0.0
    %773 = vmatprep.subr.mxu0 0.0
    %774 = vmatpush1.msra.mxu0 0.0
    %775 = vmatprep.subr.mxu0 0.0
    %776 = vmatpush1.msra.mxu0 0.0
    %777 = vmatprep.subr.mxu0 0.0
    %778 = vmatpush1.msra.mxu0 0.0
    %779 = vmatprep.subr.mxu0 0.0
    %780 = vmatpush1.msra.mxu0 0.0
    %781 = vmatprep.subr.mxu0 0.0
    %782 = vmatpush1.msra.mxu0 0.0
    %783 = vmatprep.subr.mxu0 0.0
    %784 = vmatpush1.msra.mxu0 0.0
    %785 = vmatprep.subr.mxu0 0.0
    %786 = vmatpush1.msra.mxu0 0.0
    %787 = vmatprep.subr.mxu0 0.0
    %788 = vmatpush1.msra.mxu0 0.0
    %789 = vmatprep.subr.mxu0 0.0
    %790 = vmatpush1.msra.mxu0 0.0
    %791 = vmatprep.subr.mxu0 0.0
    %792 = vmatpush1.msra.mxu0 0.0
    %793 = vmatprep.subr.mxu0 0.0
    %794 = vmatpush1.msra.mxu0 0.0
    %795 = vmatprep.subr.mxu0 0.0
    %796 = vmatpush1.msra.mxu0 0.0
    %797 = vmatprep.subr.mxu0 0.0
    %798 = vmatpush1.msra.mxu0 0.0
    %799 = vmatprep.subr.mxu0 0.0
    %800 = vmatpush1.msra.mxu0 0.0
    %801 = vmatprep.subr.mxu0 0.0
    %802 = vmatpush1.msra.mxu0 0.0
    %803 = vmatprep.subr.mxu0 0.0
    %804 = vmatpush1.msra.mxu0 0.0
    %805 = vmatprep.subr.mxu0 0.0
    %806 = vmatpush1.msra.mxu0 0.0
    %807 = vmatprep.subr.mxu0 0.0
    %808 = vmatpush1.msra.mxu0 0.0
    %809 = vmatprep.subr.mxu0 0.0
    %810 = vmatpush1.msra.mxu0 0.0
    %811 = vmatprep.subr.mxu0 0.0
    %812 = vmatpush1.msra.mxu0 0.0
    %813 = vmatprep.subr.mxu0 0.0
    %814 = vmatpush1.msra.mxu0 0.0
    %815 = vmatprep.subr.mxu0 0.0
    %816 = vmatpush1.msra.mxu0 0.0
    %817 = vmatprep.subr.mxu0 0.0
    %818 = vmatpush1.msra.mxu0 0.0
    %819 = vmatprep.subr.mxu0 0.0
    %820 = vmatpush1.msra.mxu0 0.0
    %821 = vmatprep.subr.mxu0 0.0
    %822 = vmatpush1.msra.mxu0 0.0
    %823 = vmatprep.subr.mxu0 0.0
    %824 = vmatpush1.msra.mxu0 0.0
    %825 = vmatprep.subr.mxu0 0.0
    %826 = vmatpush1.msra.mxu0 0.0
    %827 = vmatprep.mubr.f32.mxu0 0.0
    %828 = vmatmul.mubr.f32.gmra.mrb[0].mxu0 %v761
    %v829 = vpop.f32.mrb[0].mxu0
    %v830 = vadd.f32 0.0, %v829
    %v831 = vpop.f32.mrb[0].mxu0
    %832 = vdwg.mxu0
    %833 = vrot.lane.b32.xlu0 %v245, 88
    %v834 = vpop.permute.xlu0 %833
    %v837 = vsel %vm248, %v756, 0
    %839 = vmatprep.subr.mxu0 0.0
    %840 = vmatpush1.msra.mxu0 %v834
    %841 = vmatprep.subr.mxu0 0.0
    %842 = vmatpush1.msra.mxu0 0.0
    %843 = vmatprep.subr.mxu0 0.0
    %844 = vmatpush1.msra.mxu0 0.0
    %845 = vmatprep.subr.mxu0 0.0
    %846 = vmatpush1.msra.mxu0 0.0
    %847 = vmatprep.subr.mxu0 0.0
    %848 = vmatpush1.msra.mxu0 0.0
    %849 = vmatprep.subr.mxu0 0.0
    %850 = vmatpush1.msra.mxu0 0.0
    %851 = vmatprep.subr.mxu0 0.0
    %852 = vmatpush1.msra.mxu0 0.0
    %853 = vmatprep.subr.mxu0 0.0
    %854 = vmatpush1.msra.mxu0 0.0
    %855 = vmatprep.subr.mxu0 0.0
    %856 = vmatpush1.msra.mxu0 0.0
    %857 = vmatprep.subr.mxu0 0.0
    %858 = vmatpush1.msra.mxu0 0.0
    %859 = vmatprep.subr.mxu0 0.0
    %860 = vmatpush1.msra.mxu0 0.0
    %861 = vmatprep.subr.mxu0 0.0
    %862 = vmatpush1.msra.mxu0 0.0
    %863 = vmatprep.subr.mxu0 0.0
    %864 = vmatpush1.msra.mxu0 0.0
    %865 = vmatprep.subr.mxu0 0.0
    %866 = vmatpush1.msra.mxu0 0.0
    %867 = vmatprep.subr.mxu0 0.0
    %868 = vmatpush1.msra.mxu0 0.0
    %869 = vmatprep.subr.mxu0 0.0
    %870 = vmatpush1.msra.mxu0 0.0
    %871 = vmatprep.subr.mxu0 0.0
    %872 = vmatpush1.msra.mxu0 0.0
    %873 = vmatprep.subr.mxu0 0.0
    %874 = vmatpush1.msra.mxu0 0.0
    %875 = vmatprep.subr.mxu0 0.0
    %876 = vmatpush1.msra.mxu0 0.0
    %877 = vmatprep.subr.mxu0 0.0
    %878 = vmatpush1.msra.mxu0 0.0
    %879 = vmatprep.subr.mxu0 0.0
    %880 = vmatpush1.msra.mxu0 0.0
    %881 = vmatprep.subr.mxu0 0.0
    %882 = vmatpush1.msra.mxu0 0.0
    %883 = vmatprep.subr.mxu0 0.0
    %884 = vmatpush1.msra.mxu0 0.0
    %885 = vmatprep.subr.mxu0 0.0
    %886 = vmatpush1.msra.mxu0 0.0
    %887 = vmatprep.subr.mxu0 0.0
    %888 = vmatpush1.msra.mxu0 0.0
    %889 = vmatprep.subr.mxu0 0.0
    %890 = vmatpush1.msra.mxu0 0.0
    %891 = vmatprep.subr.mxu0 0.0
    %892 = vmatpush1.msra.mxu0 0.0
    %893 = vmatprep.subr.mxu0 0.0
    %894 = vmatpush1.msra.mxu0 0.0
    %895 = vmatprep.subr.mxu0 0.0
    %896 = vmatpush1.msra.mxu0 0.0
    %897 = vmatprep.subr.mxu0 0.0
    %898 = vmatpush1.msra.mxu0 0.0
    %899 = vmatprep.subr.mxu0 0.0
    %900 = vmatpush1.msra.mxu0 0.0
    %901 = vmatprep.subr.mxu0 0.0
    %902 = vmatpush1.msra.mxu0 0.0
    %903 = vmatprep.mubr.f32.mxu0 0.0
    %904 = vmatmul.mubr.f32.gmra.mrb[0].mxu0 %v837
    %v905 = vpop.f32.mrb[0].mxu0
    %v906 = vadd.f32 0.0, %v905
    %v907 = vpop.f32.mrb[0].mxu0
    %908 = vdwg.mxu0
    %909 = vrot.lane.b32.xlu0 %v155, 112
    %v910 = vpop.permute.xlu0 %909
    %911 = vrot.lane.b32.xlu0 %v240, 112
    %v912 = vpop.permute.xlu0 %911
    %v913 = vsel %vm248, %v910, 0
    %v915 = vsel %vm248, %v912, 0
    %917 = vmatprep.subr.mxu0 0.0
    %918 = vmatpush1.xpose.msra.mxu0 %v915
    %919 = vmatprep.subr.mxu0 0.0
    %920 = vmatpush1.xpose.msra.mxu0 0.0
    %921 = vmatprep.subr.mxu0 0.0
    %922 = vmatpush1.xpose.msra.mxu0 0.0
    %923 = vmatprep.subr.mxu0 0.0
    %924 = vmatpush1.xpose.msra.mxu0 0.0
    %925 = vmatprep.subr.mxu0 0.0
    %926 = vmatpush1.xpose.msra.mxu0 0.0
    %927 = vmatprep.subr.mxu0 0.0
    %928 = vmatpush1.xpose.msra.mxu0 0.0
    %929 = vmatprep.subr.mxu0 0.0
    %930 = vmatpush1.xpose.msra.mxu0 0.0
    %931 = vmatprep.subr.mxu0 0.0
    %932 = vmatpush1.xpose.msra.mxu0 0.0
    %933 = vmatprep.subr.mxu0 0.0
    %934 = vmatpush1.xpose.msra.mxu0 0.0
    %935 = vmatprep.subr.mxu0 0.0
    %936 = vmatpush1.xpose.msra.mxu0 0.0
    %937 = vmatprep.subr.mxu0 0.0
    %938 = vmatpush1.xpose.msra.mxu0 0.0
    %939 = vmatprep.subr.mxu0 0.0
    %940 = vmatpush1.xpose.msra.mxu0 0.0
    %941 = vmatprep.subr.mxu0 0.0
    %942 = vmatpush1.xpose.msra.mxu0 0.0
    %943 = vmatprep.subr.mxu0 0.0
    %944 = vmatpush1.xpose.msra.mxu0 0.0
    %945 = vmatprep.subr.mxu0 0.0
    %946 = vmatpush1.xpose.msra.mxu0 0.0
    %947 = vmatprep.subr.mxu0 0.0
    %948 = vmatpush1.xpose.msra.mxu0 0.0
    %949 = vmatprep.subr.mxu0 0.0
    %950 = vmatpush1.xpose.msra.mxu0 0.0
    %951 = vmatprep.subr.mxu0 0.0
    %952 = vmatpush1.xpose.msra.mxu0 0.0
    %953 = vmatprep.subr.mxu0 0.0
    %954 = vmatpush1.xpose.msra.mxu0 0.0
    %955 = vmatprep.subr.mxu0 0.0
    %956 = vmatpush1.xpose.msra.mxu0 0.0
    %957 = vmatprep.subr.mxu0 0.0
    %958 = vmatpush1.xpose.msra.mxu0 0.0
    %959 = vmatprep.subr.mxu0 0.0
    %960 = vmatpush1.xpose.msra.mxu0 0.0
    %961 = vmatprep.subr.mxu0 0.0
    %962 = vmatpush1.xpose.msra.mxu0 0.0
    %963 = vmatprep.subr.mxu0 0.0
    %964 = vmatpush1.xpose.msra.mxu0 0.0
    %965 = vmatprep.subr.mxu0 0.0
    %966 = vmatpush1.xpose.msra.mxu0 0.0
    %967 = vmatprep.subr.mxu0 0.0
    %968 = vmatpush1.xpose.msra.mxu0 0.0
    %969 = vmatprep.subr.mxu0 0.0
    %970 = vmatpush1.xpose.msra.mxu0 0.0
    %971 = vmatprep.subr.mxu0 0.0
    %972 = vmatpush1.xpose.msra.mxu0 0.0
    %973 = vmatprep.subr.mxu0 0.0
    %974 = vmatpush1.xpose.msra.mxu0 0.0
    %975 = vmatprep.subr.mxu0 0.0
    %976 = vmatpush1.xpose.msra.mxu0 0.0
    %977 = vmatprep.subr.mxu0 0.0
    %978 = vmatpush1.xpose.msra.mxu0 0.0
    %979 = vmatprep.subr.mxu0 0.0
    %980 = vmatpush1.xpose.msra.mxu0 0.0
    %981 = vmatprep.mubr.f32.mxu0 0.0
    %982 = vmatmul.mubr.f32.gmra.mrb[0].mxu0 %v913
    %v983 = vpop.f32.mrb[0].mxu0
    %v984 = vadd.f32 0.0, %v983
    %v985 = vpop.f32.mrb[0].mxu0
    %986 = vdwg.mxu0
    %987 = vrot.lane.b32.xlu0 %v160, 112
    %v988 = vpop.permute.xlu0 %987
    %989 = vrot.lane.b32.xlu0 %v245, 112
    %v990 = vpop.permute.xlu0 %989
    %v991 = vsel %vm248, %v988, 0
    %v993 = vsel %vm248, %v990, 0
    %995 = vmatprep.subr.mxu0 0.0
    %996 = vmatpush1.xpose.msra.mxu0 %v993
    %997 = vmatprep.subr.mxu0 0.0
    %998 = vmatpush1.xpose.msra.mxu0 0.0
    %999 = vmatprep.subr.mxu0 0.0
    %1000 = vmatpush1.xpose.msra.mxu0 0.0
    %1001 = vmatprep.subr.mxu0 0.0
    %1002 = vmatpush1.xpose.msra.mxu0 0.0
    %1003 = vmatprep.subr.mxu0 0.0
    %1004 = vmatpush1.xpose.msra.mxu0 0.0
    %1005 = vmatprep.subr.mxu0 0.0
    %1006 = vmatpush1.xpose.msra.mxu0 0.0
    %1007 = vmatprep.subr.mxu0 0.0
    %1008 = vmatpush1.xpose.msra.mxu0 0.0
    %1009 = vmatprep.subr.mxu0 0.0
    %1010 = vmatpush1.xpose.msra.mxu0 0.0
    %1011 = vmatprep.subr.mxu0 0.0
    %1012 = vmatpush1.xpose.msra.mxu0 0.0
    %1013 = vmatprep.subr.mxu0 0.0
    %1014 = vmatpush1.xpose.msra.mxu0 0.0
    %1015 = vmatprep.subr.mxu0 0.0
    %1016 = vmatpush1.xpose.msra.mxu0 0.0
    %1017 = vmatprep.subr.mxu0 0.0
    %1018 = vmatpush1.xpose.msra.mxu0 0.0
    %1019 = vmatprep.subr.mxu0 0.0
    %1020 = vmatpush1.xpose.msra.mxu0 0.0
    %1021 = vmatprep.subr.mxu0 0.0
    %1022 = vmatpush1.xpose.msra.mxu0 0.0
    %1023 = vmatprep.subr.mxu0 0.0
    %1024 = vmatpush1.xpose.msra.mxu0 0.0
    %1025 = vmatprep.subr.mxu0 0.0
    %1026 = vmatpush1.xpose.msra.mxu0 0.0
    %1027 = vmatprep.subr.mxu0 0.0
    %1028 = vmatpush1.xpose.msra.mxu0 0.0
    %1029 = vmatprep.subr.mxu0 0.0
    %1030 = vmatpush1.xpose.msra.mxu0 0.0
    %1031 = vmatprep.subr.mxu0 0.0
    %1032 = vmatpush1.xpose.msra.mxu0 0.0
    %1033 = vmatprep.subr.mxu0 0.0
    %1034 = vmatpush1.xpose.msra.mxu0 0.0
    %1035 = vmatprep.subr.mxu0 0.0
    %1036 = vmatpush1.xpose.msra.mxu0 0.0
    %1037 = vmatprep.subr.mxu0 0.0
    %1038 = vmatpush1.xpose.msra.mxu0 0.0
    %1039 = vmatprep.subr.mxu0 0.0
    %1040 = vmatpush1.xpose.msra.mxu0 0.0
    %1041 = vmatprep.subr.mxu0 0.0
    %1042 = vmatpush1.xpose.msra.mxu0 0.0
    %1043 = vmatprep.subr.mxu0 0.0
    %1044 = vmatpush1.xpose.msra.mxu0 0.0
    %1045 = vmatprep.subr.mxu0 0.0
    %1046 = vmatpush1.xpose.msra.mxu0 0.0
    %1047 = vmatprep.subr.mxu0 0.0
    %1048 = vmatpush1.xpose.msra.mxu0 0.0
    %1049 = vmatprep.subr.mxu0 0.0
    %1050 = vmatpush1.xpose.msra.mxu0 0.0
    %1051 = vmatprep.subr.mxu0 0.0
    %1052 = vmatpush1.xpose.msra.mxu0 0.0
    %1053 = vmatprep.subr.mxu0 0.0
    %1054 = vmatpush1.xpose.msra.mxu0 0.0
    %1055 = vmatprep.subr.mxu0 0.0
    %1056 = vmatpush1.xpose.msra.mxu0 0.0
    %1057 = vmatprep.subr.mxu0 0.0
    %1058 = vmatpush1.xpose.msra.mxu0 0.0
    %1059 = vmatprep.mubr.f32.mxu0 0.0
    %1060 = vmatmul.mubr.f32.gmra.mrb[0].mxu0 %v991
    %v1061 = vpop.f32.mrb[0].mxu0
    %v1062 = vadd.f32 0.0, %v1061
    %v1063 = vpop.f32.mrb[0].mxu0
    %1064 = vdwg.mxu0
    %v1065 = vmul.f32 %v984, 0.17677669
    %v1066 = vmul.f32 %v1062, 0.17677669
    %v1067 = vsel %vm248, %v1065, -inf
    %1068 = vmax.xlane.f32.xlu0 %v1067
    %v1069 = vpop.xlane.xlu0 %1068
    %v1070 = vsel %vm248, %v1066, -inf
    %1071 = vmax.xlane.f32.xlu0 %v1070
    %v1072 = vpop.xlane.xlu0 %1071
    %v1073 = vsub.f32 %v1065, %v1069
    %v1074 = vsub.f32 %v1066, %v1072
    %v1075 = vmul.f32 %v1073, 1.442695
    %v1076 = vpow.pop %v1075
    %v1077 = vmul.f32 %v1074, 1.442695
    %v1078 = vpow.pop %v1077
    %v1079 = vsel %vm248, %v1076, 0.0
    %1080 = vadd.xlane.f32.xlu0 %v1079
    %v1081 = vpop.xlane.xlu0 %1080
    %v1082 = vsel %vm248, %v1078, 0.0
    %1083 = vadd.xlane.f32.xlu0 %v1082
    %v1084 = vpop.xlane.xlu0 %1083
    %v1085 = vrcp.pop %v1081
    %v1086 = vrcp.pop %v1084
    %v1087 = vmul.f32 %v1076, %v1085
    %v1088 = vmul.f32 %v1078, %v1086
    %1089 = vrot.lane.b32.xlu0 %v240, 80
    %v1090 = vpop.permute.xlu0 %1089
    %v1093 = vsel %vm248, %v1087, 0
    %1095 = vmatprep.subr.mxu0 0.0
    %1096 = vmatpush1.msra.mxu0 %v1090
    %1097 = vmatprep.subr.mxu0 0.0
    %1098 = vmatpush1.msra.mxu0 0.0
    %1099 = vmatprep.subr.mxu0 0.0
    %1100 = vmatpush1.msra.mxu0 0.0
    %1101 = vmatprep.subr.mxu0 0.0
    %1102 = vmatpush1.msra.mxu0 0.0
    %1103 = vmatprep.subr.mxu0 0.0
    %1104 = vmatpush1.msra.mxu0 0.0
    %1105 = vmatprep.subr.mxu0 0.0
    %1106 = vmatpush1.msra.mxu0 0.0
    %1107 = vmatprep.subr.mxu0 0.0
    %1108 = vmatpush1.msra.mxu0 0.0
    %1109 = vmatprep.subr.mxu0 0.0
    %1110 = vmatpush1.msra.mxu0 0.0
    %1111 = vmatprep.subr.mxu0 0.0
    %1112 = vmatpush1.msra.mxu0 0.0
    %1113 = vmatprep.subr.mxu0 0.0
    %1114 = vmatpush1.msra.mxu0 0.0
    %1115 = vmatprep.subr.mxu0 0.0
    %1116 = vmatpush1.msra.mxu0 0.0
    %1117 = vmatprep.subr.mxu0 0.0
    %1118 = vmatpush1.msra.mxu0 0.0
    %1119 = vmatprep.subr.mxu0 0.0
    %1120 = vmatpush1.msra.mxu0 0.0
    %1121 = vmatprep.subr.mxu0 0.0
    %1122 = vmatpush1.msra.mxu0 0.0
    %1123 = vmatprep.subr.mxu0 0.0
    %1124 = vmatpush1.msra.mxu0 0.0
    %1125 = vmatprep.subr.mxu0 0.0
    %1126 = vmatpush1.msra.mxu0 0.0
    %1127 = vmatprep.subr.mxu0 0.0
    %1128 = vmatpush1.msra.mxu0 0.0
    %1129 = vmatprep.subr.mxu0 0.0
    %1130 = vmatpush1.msra.mxu0 0.0
    %1131 = vmatprep.subr.mxu0 0.0
    %1132 = vmatpush1.msra.mxu0 0.0
    %1133 = vmatprep.subr.mxu0 0.0
    %1134 = vmatpush1.msra.mxu0 0.0
    %1135 = vmatprep.subr.mxu0 0.0
    %1136 = vmatpush1.msra.mxu0 0.0
    %1137 = vmatprep.subr.mxu0 0.0
    %1138 = vmatpush1.msra.mxu0 0.0
    %1139 = vmatprep.subr.mxu0 0.0
    %1140 = vmatpush1.msra.mxu0 0.0
    %1141 = vmatprep.subr.mxu0 0.0
    %1142 = vmatpush1.msra.mxu0 0.0
    %1143 = vmatprep.subr.mxu0 0.0
    %1144 = vmatpush1.msra.mxu0 0.0
    %1145 = vmatprep.subr.mxu0 0.0
    %1146 = vmatpush1.msra.mxu0 0.0
    %1147 = vmatprep.subr.mxu0 0.0
    %1148 = vmatpush1.msra.mxu0 0.0
    %1149 = vmatprep.subr.mxu0 0.0
    %1150 = vmatpush1.msra.mxu0 0.0
    %1151 = vmatprep.subr.mxu0 0.0
    %1152 = vmatpush1.msra.mxu0 0.0
    %1153 = vmatprep.subr.mxu0 0.0
    %1154 = vmatpush1.msra.mxu0 0.0
    %1155 = vmatprep.subr.mxu0 0.0
    %1156 = vmatpush1.msra.mxu0 0.0
    %1157 = vmatprep.subr.mxu0 0.0
    %1158 = vmatpush1.msra.mxu0 0.0
    %1159 = vmatprep.mubr.f32.mxu0 0.0
    %1160 = vmatmul.mubr.f32.gmra.mrb[0].mxu0 %v1093
    %v1161 = vpop.f32.mrb[0].mxu0
    %v1162 = vadd.f32 0.0, %v1161
    %v1163 = vpop.f32.mrb[0].mxu0
    %1164 = vdwg.mxu0
    %1165 = vrot.lane.b32.xlu0 %v245, 80
    %v1166 = vpop.permute.xlu0 %1165
    %v1169 = vsel %vm248, %v1088, 0
    %1171 = vmatprep.subr.mxu0 0.0
    %1172 = vmatpush1.msra.mxu0 %v1166
    %1173 = vmatprep.subr.mxu0 0.0
    %1174 = vmatpush1.msra.mxu0 0.0
    %1175 = vmatprep.subr.mxu0 0.0
    %1176 = vmatpush1.msra.mxu0 0.0
    %1177 = vmatprep.subr.mxu0 0.0
    %1178 = vmatpush1.msra.mxu0 0.0
    %1179 = vmatprep.subr.mxu0 0.0
    %1180 = vmatpush1.msra.mxu0 0.0
    %1181 = vmatprep.subr.mxu0 0.0
    %1182 = vmatpush1.msra.mxu0 0.0
    %1183 = vmatprep.subr.mxu0 0.0
    %1184 = vmatpush1.msra.mxu0 0.0
    %1185 = vmatprep.subr.mxu0 0.0
    %1186 = vmatpush1.msra.mxu0 0.0
    %1187 = vmatprep.subr.mxu0 0.0
    %1188 = vmatpush1.msra.mxu0 0.0
    %1189 = vmatprep.subr.mxu0 0.0
    %1190 = vmatpush1.msra.mxu0 0.0
    %1191 = vmatprep.subr.mxu0 0.0
    %1192 = vmatpush1.msra.mxu0 0.0
    %1193 = vmatprep.subr.mxu0 0.0
    %1194 = vmatpush1.msra.mxu0 0.0
    %1195 = vmatprep.subr.mxu0 0.0
    %1196 = vmatpush1.msra.mxu0 0.0
    %1197 = vmatprep.subr.mxu0 0.0
    %1198 = vmatpush1.msra.mxu0 0.0
    %1199 = vmatprep.subr.mxu0 0.0
    %1200 = vmatpush1.msra.mxu0 0.0
    %1201 = vmatprep.subr.mxu0 0.0
    %1202 = vmatpush1.msra.mxu0 0.0
    %1203 = vmatprep.subr.mxu0 0.0
    %1204 = vmatpush1.msra.mxu0 0.0
    %1205 = vmatprep.subr.mxu0 0.0
    %1206 = vmatpush1.msra.mxu0 0.0
    %1207 = vmatprep.subr.mxu0 0.0
    %1208 = vmatpush1.msra.mxu0 0.0
    %1209 = vmatprep.subr.mxu0 0.0
    %1210 = vmatpush1.msra.mxu0 0.0
    %1211 = vmatprep.subr.mxu0 0.0
    %1212 = vmatpush1.msra.mxu0 0.0
    %1213 = vmatprep.subr.mxu0 0.0
    %1214 = vmatpush1.msra.mxu0 0.0
    %1215 = vmatprep.subr.mxu0 0.0
    %1216 = vmatpush1.msra.mxu0 0.0
    %1217 = vmatprep.subr.mxu0 0.0
    %1218 = vmatpush1.msra.mxu0 0.0
    %1219 = vmatprep.subr.mxu0 0.0
    %1220 = vmatpush1.msra.mxu0 0.0
    %1221 = vmatprep.subr.mxu0 0.0
    %1222 = vmatpush1.msra.mxu0 0.0
    %1223 = vmatprep.subr.mxu0 0.0
    %1224 = vmatpush1.msra.mxu0 0.0
    %1225 = vmatprep.subr.mxu0 0.0
    %1226 = vmatpush1.msra.mxu0 0.0
    %1227 = vmatprep.subr.mxu0 0.0
    %1228 = vmatpush1.msra.mxu0 0.0
    %1229 = vmatprep.subr.mxu0 0.0
    %1230 = vmatpush1.msra.mxu0 0.0
    %1231 = vmatprep.subr.mxu0 0.0
    %1232 = vmatpush1.msra.mxu0 0.0
    %1233 = vmatprep.subr.mxu0 0.0
    %1234 = vmatpush1.msra.mxu0 0.0
    %1235 = vmatprep.mubr.f32.mxu0 0.0
    %1236 = vmatmul.mubr.f32.gmra.mrb[0].mxu0 %v1169
    %v1237 = vpop.f32.mrb[0].mxu0
    %v1238 = vadd.f32 0.0, %v1237
    %v1239 = vpop.f32.mrb[0].mxu0
    %1240 = vdwg.mxu0
    %1241 = vrot.lane.b32.xlu0 %v155, 104
    %v1242 = vpop.permute.xlu0 %1241
    %1243 = vrot.lane.b32.xlu0 %v240, 104
    %v1244 = vpop.permute.xlu0 %1243
    %v1245 = vsel %vm248, %v1242, 0
    %v1247 = vsel %vm248, %v1244, 0
    %1249 = vmatprep.subr.mxu0 0.0
    %1250 = vmatpush1.xpose.msra.mxu0 %v1247
    %1251 = vmatprep.subr.mxu0 0.0
    %1252 = vmatpush1.xpose.msra.mxu0 0.0
    %1253 = vmatprep.subr.mxu0 0.0
    %1254 = vmatpush1.xpose.msra.mxu0 0.0
    %1255 = vmatprep.subr.mxu0 0.0
    %1256 = vmatpush1.xpose.msra.mxu0 0.0
    %1257 = vmatprep.subr.mxu0 0.0
    %1258 = vmatpush1.xpose.msra.mxu0 0.0
    %1259 = vmatprep.subr.mxu0 0.0
    %1260 = vmatpush1.xpose.msra.mxu0 0.0
    %1261 = vmatprep.subr.mxu0 0.0
    %1262 = vmatpush1.xpose.msra.mxu0 0.0
    %1263 = vmatprep.subr.mxu0 0.0
    %1264 = vmatpush1.xpose.msra.mxu0 0.0
    %1265 = vmatprep.subr.mxu0 0.0
    %1266 = vmatpush1.xpose.msra.mxu0 0.0
    %1267 = vmatprep.subr.mxu0 0.0
    %1268 = vmatpush1.xpose.msra.mxu0 0.0
    %1269 = vmatprep.subr.mxu0 0.0
    %1270 = vmatpush1.xpose.msra.mxu0 0.0
    %1271 = vmatprep.subr.mxu0 0.0
    %1272 = vmatpush1.xpose.msra.mxu0 0.0
    %1273 = vmatprep.subr.mxu0 0.0
    %1274 = vmatpush1.xpose.msra.mxu0 0.0
    %1275 = vmatprep.subr.mxu0 0.0
    %1276 = vmatpush1.xpose.msra.mxu0 0.0
    %1277 = vmatprep.subr.mxu0 0.0
    %1278 = vmatpush1.xpose.msra.mxu0 0.0
    %1279 = vmatprep.subr.mxu0 0.0
    %1280 = vmatpush1.xpose.msra.mxu0 0.0
    %1281 = vmatprep.subr.mxu0 0.0
    %1282 = vmatpush1.xpose.msra.mxu0 0.0
    %1283 = vmatprep.subr.mxu0 0.0
    %1284 = vmatpush1.xpose.msra.mxu0 0.0
    %1285 = vmatprep.subr.mxu0 0.0
    %1286 = vmatpush1.xpose.msra.mxu0 0.0
    %1287 = vmatprep.subr.mxu0 0.0
    %1288 = vmatpush1.xpose.msra.mxu0 0.0
    %1289 = vmatprep.subr.mxu0 0.0
    %1290 = vmatpush1.xpose.msra.mxu0 0.0
    %1291 = vmatprep.subr.mxu0 0.0
    %1292 = vmatpush1.xpose.msra.mxu0 0.0
    %1293 = vmatprep.subr.mxu0 0.0
    %1294 = vmatpush1.xpose.msra.mxu0 0.0
    %1295 = vmatprep.subr.mxu0 0.0
    %1296 = vmatpush1.xpose.msra.mxu0 0.0
    %1297 = vmatprep.subr.mxu0 0.0
    %1298 = vmatpush1.xpose.msra.mxu0 0.0
    %1299 = vmatprep.subr.mxu0 0.0
    %1300 = vmatpush1.xpose.msra.mxu0 0.0
    %1301 = vmatprep.subr.mxu0 0.0
    %1302 = vmatpush1.xpose.msra.mxu0 0.0
    %1303 = vmatprep.subr.mxu0 0.0
    %1304 = vmatpush1.xpose.msra.mxu0 0.0
    %1305 = vmatprep.subr.mxu0 0.0
    %1306 = vmatpush1.xpose.msra.mxu0 0.0
    %1307 = vmatprep.subr.mxu0 0.0
    %1308 = vmatpush1.xpose.msra.mxu0 0.0
    %1309 = vmatprep.subr.mxu0 0.0
    %1310 = vmatpush1.xpose.msra.mxu0 0.0
    %1311 = vmatprep.subr.mxu0 0.0
    %1312 = vmatpush1.xpose.msra.mxu0 0.0
    %1313 = vmatprep.mubr.f32.mxu0 0.0
    %1314 = vmatmul.mubr.f32.gmra.mrb[0].mxu0 %v1245
    %v1315 = vpop.f32.mrb[0].mxu0
    %v1316 = vadd.f32 0.0, %v1315
    %v1317 = vpop.f32.mrb[0].mxu0
    %1318 = vdwg.mxu0
    %1319 = vrot.lane.b32.xlu0 %v160, 104
    %v1320 = vpop.permute.xlu0 %1319
    %1321 = vrot.lane.b32.xlu0 %v245, 104
    %v1322 = vpop.permute.xlu0 %1321
    %v1323 = vsel %vm248, %v1320, 0
    %v1325 = vsel %vm248, %v1322, 0
    %1327 = vmatprep.subr.mxu0 0.0
    %1328 = vmatpush1.xpose.msra.mxu0 %v1325
    %1329 = vmatprep.subr.mxu0 0.0
    %1330 = vmatpush1.xpose.msra.mxu0 0.0
    %1331 = vmatprep.subr.mxu0 0.0
    %1332 = vmatpush1.xpose.msra.mxu0 0.0
    %1333 = vmatprep.subr.mxu0 0.0
    %1334 = vmatpush1.xpose.msra.mxu0 0.0
    %1335 = vmatprep.subr.mxu0 0.0
    %1336 = vmatpush1.xpose.msra.mxu0 0.0
    %1337 = vmatprep.subr.mxu0 0.0
    %1338 = vmatpush1.xpose.msra.mxu0 0.0
    %1339 = vmatprep.subr.mxu0 0.0
    %1340 = vmatpush1.xpose.msra.mxu0 0.0
    %1341 = vmatprep.subr.mxu0 0.0
    %1342 = vmatpush1.xpose.msra.mxu0 0.0
    %1343 = vmatprep.subr.mxu0 0.0
    %1344 = vmatpush1.xpose.msra.mxu0 0.0
    %1345 = vmatprep.subr.mxu0 0.0
    %1346 = vmatpush1.xpose.msra.mxu0 0.0
    %1347 = vmatprep.subr.mxu0 0.0
    %1348 = vmatpush1.xpose.msra.mxu0 0.0
    %1349 = vmatprep.subr.mxu0 0.0
    %1350 = vmatpush1.xpose.msra.mxu0 0.0
    %1351 = vmatprep.subr.mxu0 0.0
    %1352 = vmatpush1.xpose.msra.mxu0 0.0
    %1353 = vmatprep.subr.mxu0 0.0
    %1354 = vmatpush1.xpose.msra.mxu0 0.0
    %1355 = vmatprep.subr.mxu0 0.0
    %1356 = vmatpush1.xpose.msra.mxu0 0.0
    %1357 = vmatprep.subr.mxu0 0.0
    %1358 = vmatpush1.xpose.msra.mxu0 0.0
    %1359 = vmatprep.subr.mxu0 0.0
    %1360 = vmatpush1.xpose.msra.mxu0 0.0
    %1361 = vmatprep.subr.mxu0 0.0
    %1362 = vmatpush1.xpose.msra.mxu0 0.0
    %1363 = vmatprep.subr.mxu0 0.0
    %1364 = vmatpush1.xpose.msra.mxu0 0.0
    %1365 = vmatprep.subr.mxu0 0.0
    %1366 = vmatpush1.xpose.msra.mxu0 0.0
    %1367 = vmatprep.subr.mxu0 0.0
    %1368 = vmatpush1.xpose.msra.mxu0 0.0
    %1369 = vmatprep.subr.mxu0 0.0
    %1370 = vmatpush1.xpose.msra.mxu0 0.0
    %1371 = vmatprep.subr.mxu0 0.0
    %1372 = vmatpush1.xpose.msra.mxu0 0.0
    %1373 = vmatprep.subr.mxu0 0.0
    %1374 = vmatpush1.xpose.msra.mxu0 0.0
    %1375 = vmatprep.subr.mxu0 0.0
    %1376 = vmatpush1.xpose.msra.mxu0 0.0
    %1377 = vmatprep.subr.mxu0 0.0
    %1378 = vmatpush1.xpose.msra.mxu0 0.0
    %1379 = vmatprep.subr.mxu0 0.0
    %1380 = vmatpush1.xpose.msra.mxu0 0.0
    %1381 = vmatprep.subr.mxu0 0.0
    %1382 = vmatpush1.xpose.msra.mxu0 0.0
    %1383 = vmatprep.subr.mxu0 0.0
    %1384 = vmatpush1.xpose.msra.mxu0 0.0
    %1385 = vmatprep.subr.mxu0 0.0
    %1386 = vmatpush1.xpose.msra.mxu0 0.0
    %1387 = vmatprep.subr.mxu0 0.0
    %1388 = vmatpush1.xpose.msra.mxu0 0.0
    %1389 = vmatprep.subr.mxu0 0.0
    %1390 = vmatpush1.xpose.msra.mxu0 0.0
    %1391 = vmatprep.mubr.f32.mxu0 0.0
    %1392 = vmatmul.mubr.f32.gmra.mrb[0].mxu0 %v1323
    %v1393 = vpop.f32.mrb[0].mxu0
    %v1394 = vadd.f32 0.0, %v1393
    %v1395 = vpop.f32.mrb[0].mxu0
    %1396 = vdwg.mxu0
    %v1397 = vmul.f32 %v1316, 0.17677669
    %v1398 = vmul.f32 %v1394, 0.17677669
    %v1399 = vsel %vm248, %v1397, -inf
    %1400 = vmax.xlane.f32.xlu0 %v1399
    %v1401 = vpop.xlane.xlu0 %1400
    %v1402 = vsel %vm248, %v1398, -inf
    %1403 = vmax.xlane.f32.xlu0 %v1402
    %v1404 = vpop.xlane.xlu0 %1403
    %v1405 = vsub.f32 %v1397, %v1401
    %v1406 = vsub.f32 %v1398, %v1404
    %v1407 = vmul.f32 %v1405, 1.442695
    %v1408 = vpow.pop %v1407
    %v1409 = vmul.f32 %v1406, 1.442695
    %v1410 = vpow.pop %v1409
    %v1411 = vsel %vm248, %v1408, 0.0
    %1412 = vadd.xlane.f32.xlu0 %v1411
    %v1413 = vpop.xlane.xlu0 %1412
    %v1414 = vsel %vm248, %v1410, 0.0
    %1415 = vadd.xlane.f32.xlu0 %v1414
    %v1416 = vpop.xlane.xlu0 %1415
    %v1417 = vrcp.pop %v1413
    %v1418 = vrcp.pop %v1416
    %v1419 = vmul.f32 %v1408, %v1417
    %v1420 = vmul.f32 %v1410, %v1418
    %1421 = vrot.lane.b32.xlu0 %v240, 72
    %v1422 = vpop.permute.xlu0 %1421
    %v1425 = vsel %vm248, %v1419, 0
    %1427 = vmatprep.subr.mxu0 0.0
    %1428 = vmatpush1.msra.mxu0 %v1422
    %1429 = vmatprep.subr.mxu0 0.0
    %1430 = vmatpush1.msra.mxu0 0.0
    %1431 = vmatprep.subr.mxu0 0.0
    %1432 = vmatpush1.msra.mxu0 0.0
    %1433 = vmatprep.subr.mxu0 0.0
    %1434 = vmatpush1.msra.mxu0 0.0
    %1435 = vmatprep.subr.mxu0 0.0
    %1436 = vmatpush1.msra.mxu0 0.0
    %1437 = vmatprep.subr.mxu0 0.0
    %1438 = vmatpush1.msra.mxu0 0.0
    %1439 = vmatprep.subr.mxu0 0.0
    %1440 = vmatpush1.msra.mxu0 0.0
    %1441 = vmatprep.subr.mxu0 0.0
    %1442 = vmatpush1.msra.mxu0 0.0
    %1443 = vmatprep.subr.mxu0 0.0
    %1444 = vmatpush1.msra.mxu0 0.0
    %1445 = vmatprep.subr.mxu0 0.0
    %1446 = vmatpush1.msra.mxu0 0.0
    %1447 = vmatprep.subr.mxu0 0.0
    %1448 = vmatpush1.msra.mxu0 0.0
    %1449 = vmatprep.subr.mxu0 0.0
    %1450 = vmatpush1.msra.mxu0 0.0
    %1451 = vmatprep.subr.mxu0 0.0
    %1452 = vmatpush1.msra.mxu0 0.0
    %1453 = vmatprep.subr.mxu0 0.0
    %1454 = vmatpush1.msra.mxu0 0.0
    %1455 = vmatprep.subr.mxu0 0.0
    %1456 = vmatpush1.msra.mxu0 0.0
    %1457 = vmatprep.subr.mxu0 0.0
    %1458 = vmatpush1.msra.mxu0 0.0
    %1459 = vmatprep.subr.mxu0 0.0
    %1460 = vmatpush1.msra.mxu0 0.0
    %1461 = vmatprep.subr.mxu0 0.0
    %1462 = vmatpush1.msra.mxu0 0.0
    %1463 = vmatprep.subr.mxu0 0.0
    %1464 = vmatpush1.msra.mxu0 0.0
    %1465 = vmatprep.subr.mxu0 0.0
    %1466 = vmatpush1.msra.mxu0 0.0
    %1467 = vmatprep.subr.mxu0 0.0
    %1468 = vmatpush1.msra.mxu0 0.0
    %1469 = vmatprep.subr.mxu0 0.0
    %1470 = vmatpush1.msra.mxu0 0.0
    %1471 = vmatprep.subr.mxu0 0.0
    %1472 = vmatpush1.msra.mxu0 0.0
    %1473 = vmatprep.subr.mxu0 0.0
    %1474 = vmatpush1.msra.mxu0 0.0
    %1475 = vmatprep.subr.mxu0 0.0
    %1476 = vmatpush1.msra.mxu0 0.0
    %1477 = vmatprep.subr.mxu0 0.0
    %1478 = vmatpush1.msra.mxu0 0.0
    %1479 = vmatprep.subr.mxu0 0.0
    %1480 = vmatpush1.msra.mxu0 0.0
    %1481 = vmatprep.subr.mxu0 0.0
    %1482 = vmatpush1.msra.mxu0 0.0
    %1483 = vmatprep.subr.mxu0 0.0
    %1484 = vmatpush1.msra.mxu0 0.0
    %1485 = vmatprep.subr.mxu0 0.0
    %1486 = vmatpush1.msra.mxu0 0.0
    %1487 = vmatprep.subr.mxu0 0.0
    %1488 = vmatpush1.msra.mxu0 0.0
    %1489 = vmatprep.subr.mxu0 0.0
    %1490 = vmatpush1.msra.mxu0 0.0
    %1491 = vmatprep.mubr.f32.mxu0 0.0
    %1492 = vmatmul.mubr.f32.gmra.mrb[0].mxu0 %v1425
    %v1493 = vpop.f32.mrb[0].mxu0
    %v1494 = vadd.f32 0.0, %v1493
    %v1495 = vpop.f32.mrb[0].mxu0
    %1496 = vdwg.mxu0
    %1497 = vrot.lane.b32.xlu0 %v245, 72
    %v1498 = vpop.permute.xlu0 %1497
    %v1501 = vsel %vm248, %v1420, 0
    %1503 = vmatprep.subr.mxu0 0.0
    %1504 = vmatpush1.msra.mxu0 %v1498
    %1505 = vmatprep.subr.mxu0 0.0
    %1506 = vmatpush1.msra.mxu0 0.0
    %1507 = vmatprep.subr.mxu0 0.0
    %1508 = vmatpush1.msra.mxu0 0.0
    %1509 = vmatprep.subr.mxu0 0.0
    %1510 = vmatpush1.msra.mxu0 0.0
    %1511 = vmatprep.subr.mxu0 0.0
    %1512 = vmatpush1.msra.mxu0 0.0
    %1513 = vmatprep.subr.mxu0 0.0
    %1514 = vmatpush1.msra.mxu0 0.0
    %1515 = vmatprep.subr.mxu0 0.0
    %1516 = vmatpush1.msra.mxu0 0.0
    %1517 = vmatprep.subr.mxu0 0.0
    %1518 = vmatpush1.msra.mxu0 0.0
    %1519 = vmatprep.subr.mxu0 0.0
    %1520 = vmatpush1.msra.mxu0 0.0
    %1521 = vmatprep.subr.mxu0 0.0
    %1522 = vmatpush1.msra.mxu0 0.0
    %1523 = vmatprep.subr.mxu0 0.0
    %1524 = vmatpush1.msra.mxu0 0.0
    %1525 = vmatprep.subr.mxu0 0.0
    %1526 = vmatpush1.msra.mxu0 0.0
    %1527 = vmatprep.subr.mxu0 0.0
    %1528 = vmatpush1.msra.mxu0 0.0
    %1529 = vmatprep.subr.mxu0 0.0
    %1530 = vmatpush1.msra.mxu0 0.0
    %1531 = vmatprep.subr.mxu0 0.0
    %1532 = vmatpush1.msra.mxu0 0.0
    %1533 = vmatprep.subr.mxu0 0.0
    %1534 = vmatpush1.msra.mxu0 0.0
    %1535 = vmatprep.subr.mxu0 0.0
    %1536 = vmatpush1.msra.mxu0 0.0
    %1537 = vmatprep.subr.mxu0 0.0
    %1538 = vmatpush1.msra.mxu0 0.0
    %1539 = vmatprep.subr.mxu0 0.0
    %1540 = vmatpush1.msra.mxu0 0.0
    %1541 = vmatprep.subr.mxu0 0.0
    %1542 = vmatpush1.msra.mxu0 0.0
    %1543 = vmatprep.subr.mxu0 0.0
    %1544 = vmatpush1.msra.mxu0 0.0
    %1545 = vmatprep.subr.mxu0 0.0
    %1546 = vmatpush1.msra.mxu0 0.0
    %1547 = vmatprep.subr.mxu0 0.0
    %1548 = vmatpush1.msra.mxu0 0.0
    %1549 = vmatprep.subr.mxu0 0.0
    %1550 = vmatpush1.msra.mxu0 0.0
    %1551 = vmatprep.subr.mxu0 0.0
    %1552 = vmatpush1.msra.mxu0 0.0
    %1553 = vmatprep.subr.mxu0 0.0
    %1554 = vmatpush1.msra.mxu0 0.0
    %1555 = vmatprep.subr.mxu0 0.0
    %1556 = vmatpush1.msra.mxu0 0.0
    %1557 = vmatprep.subr.mxu0 0.0
    %1558 = vmatpush1.msra.mxu0 0.0
    %1559 = vmatprep.subr.mxu0 0.0
    %1560 = vmatpush1.msra.mxu0 0.0
    %1561 = vmatprep.subr.mxu0 0.0
    %1562 = vmatpush1.msra.mxu0 0.0
    %1563 = vmatprep.subr.mxu0 0.0
    %1564 = vmatpush1.msra.mxu0 0.0
    %1565 = vmatprep.subr.mxu0 0.0
    %1566 = vmatpush1.msra.mxu0 0.0
    %1567 = vmatprep.mubr.f32.mxu0 0.0
    %1568 = vmatmul.mubr.f32.gmra.mrb[0].mxu0 %v1501
    %v1569 = vpop.f32.mrb[0].mxu0
    %v1570 = vadd.f32 0.0, %v1569
    %v1571 = vpop.f32.mrb[0].mxu0
    %1572 = vdwg.mxu0
    %1575 = vrot.lane.b32.xlu0 %v830, 8
    %v1576 = vpop.permute.xlu0 %1575
    %1577 = vrot.lane.b32.xlu0 %v906, 8
    %v1578 = vpop.permute.xlu0 %1577
    %1583 = vrot.lane.b32.xlu0 %v1162, 16
    %v1584 = vpop.permute.xlu0 %1583
    %1585 = vrot.lane.b32.xlu0 %v1238, 16
    %v1586 = vpop.permute.xlu0 %1585
    %1591 = vrot.lane.b32.xlu0 %v1494, 24
    %v1592 = vpop.permute.xlu0 %1591
    %1593 = vrot.lane.b32.xlu0 %v1570, 24
    %v1594 = vpop.permute.xlu0 %1593
    %v1597 = vsel %vm248, %v498, %v1576
    %v1598 = vsel %vm248, %v574, %v1578
    %vm1599 = vcmask 130048
    %v1600 = vsel %vm1599, %v1597, %v1584
    %v1601 = vsel %vm1599, %v1598, %v1586
    %vm1602 = vcmask 195584
    %v1603 = vsel %vm1602, %v1600, %v1592
    %v1604 = vsel %vm1602, %v1601, %v1594
    %1605 = vst.msk [vmem:[#allocation10] sm:$0xff] %vm81, %v1603
    %1606 = vst.msk [vmem:[#allocation10 + $0x8] sm:$0xff] %vm81, %v1604
    // Predicated region
    $region34: #{tpu_custom_call.1} parent=1 // pred_check
      _
    $region35: #{tpu_custom_call.1} parent=1 // pred_check_branch
      %1608 = sbr.rel (0) target = $region37
    $region36: #{tpu_custom_call.1} parent=1 // pred_region
      %s1610 = ssub.s32 256, 256
      %1611 = vsyncadd [#allocation4], %s1610
      %s1612 = sshll.u32 [#allocation10], 4
      %s1613 = int_to_ptr.vmem [resolvable:$true] %s1612
      %1618 = dma.vmem_to_hbm [thread:$0]  %s1613, 256, %s4, [#allocation4], 128, 128, 8
    $region37: #{tpu_custom_call.1} parent=1 // pred_fallthru
      _
    // Predicated region
    $region38: #{tpu_custom_call.1} parent=1 // pred_check
      _
    $region39: #{tpu_custom_call.1} parent=1 // pred_check_branch
      %1620 = sbr.rel (0) target = $region41
    $region40: #{tpu_custom_call.1} parent=1 // pred_region
      %1621 = dma.done [#allocation4], 256
    $region41: #{tpu_custom_call.1} parent=1 // pred_fallthru
      _
    %1622 = vsyncpa [#allocation3], 1
    %1623 = vsyncpa [#allocation6], 1
    %1624 = vsyncpa [#allocation9], 1
    %1625 = vsyncpa [#allocation4], 1

</llo_original>
